<compile_context>
chip_gen: v6e
topology: v6e:2x2x1
jax: 0.10.0
libtpu: 0.0.40
codegen_flags: <defaults>
</compile_context>

<pallas_src>
import functools

import numpy as np
import jax
import jax.numpy as jnp
from jax import lax
from jax.experimental import pallas as pl
from jax.experimental.pallas import tpu as pltpu

NEG_SLOPE = 0.01   # torch.nn.LeakyReLU default
BN_EPS = 1e-5      # torch.nn.BatchNorm2d default


# ----------------------------- host-side constants ---------------------------

def _round_up8(n):
    return -(-n // 8) * 8


def _adaptive_pool_matrix(in_size, out_size):
    """Exact AdaptiveAvgPool1d as an (out_size, in_size) averaging matrix."""
    P = np.zeros((out_size, in_size), dtype=np.float32)
    for o in range(out_size):
        start = (o * in_size) // out_size
        end = -((-(o + 1) * in_size) // out_size)   # ceil((o+1)*in/out)
        P[o, start:end] = 1.0 / (end - start)
    return P


def _valid_tap_masks(n, h, w):
    """(9, 1, n*h*w) {0,1} masks: tap t=(dy+1)*3+(dx+1) valid iff source pixel
    (y+dy, x+dx) of output pixel p lies inside the (zero-padded) image."""
    npix = n * h * w
    p = np.arange(npix)
    py = (p // w) % h
    px = p % w
    masks = []
    for dy in (-1, 0, 1):
        for dx in (-1, 0, 1):
            ok = ((py + dy >= 0) & (py + dy < h) &
                  (px + dx >= 0) & (px + dx < w))
            masks.append(ok.astype(np.float32))
    return np.stack(masks, axis=0).reshape(9, 1, npix)


# ------------------------------ Pallas kernel --------------------------------

def _conv3x3_roll(feat, w_flat, valid_ref, width):
    """3x3 / stride-1 / pad-1 conv on a lane-major (C, npix) feature map.

    feat     : (C_in, npix) f32 value; lane index p = n*H*W + y*W + x
    w_flat   : (C_out, 9*C_in) f32 value, columns ordered (tap, cin)
    valid_ref: (9, 1, npix) ref of {0,1} boundary masks, tap t=(dy+1)*3+(dx+1)
    width    : W (row stride inside the flattened pixel index)

    The shifted gather is a static lane roll (XLU) + boundary mask (VPU); the
    9 masked maps are stacked so the whole conv is ONE MXU matmul.
    """
    _, npix = feat.shape
    taps = []
    t = 0
    for dy in (-1, 0, 1):
        for dx in (-1, 0, 1):
            d = dy * width + dx
            if d == 0:
                taps.append(feat)                       # center tap: no shift, all valid
            else:
                shifted = pltpu.roll(feat, shift=(-d) % npix, axis=1)
                taps.append(shifted * valid_ref[t])     # zero out-of-bounds taps
            t += 1
    xcol = jnp.concatenate(taps, axis=0)                # (9*C_in, npix)
    return jnp.dot(w_flat, xcol, preferred_element_type=jnp.float32)


def _res_module_kernel(x_ref, wm_ref, w23_ref, smalls_ref, valid1_ref,
                       valid2_ref, pool_hbm_ref, o_ref, pool_vmem, pool_sem,
                       *, w_in, w_out):
    # Kick off the pooling-matrix DMA now; it overlaps with stage 1 compute.
    pool_cp = pltpu.make_async_copy(pool_hbm_ref, pool_vmem, pool_sem)
    pool_cp.start()

    # --- stage 1: conv1 (main) + conv_res merged: rolls + one MXU matmul -----
    conv1 = _conv3x3_roll(x_ref[...], wm_ref[...], valid1_ref, w_in)   # (2Co, N*H*W)

    # --- stage 2: adaptive average pool of both branches (one matmul) --------
    pool_cp.wait()
    pooled = jnp.dot(conv1, pool_vmem[...],
                     preferred_element_type=jnp.float32)               # (2Co, N*Ho*Wo)
    co = o_ref.shape[0]
    b1    = smalls_ref[:, 0:1]
    bres  = smalls_ref[:, 1:2]
    b2    = smalls_ref[:, 2:3]
    b3    = smalls_ref[:, 3:4]
    gamma = smalls_ref[:, 4:5]
    beta  = smalls_ref[:, 5:6]
    # conv biases are applied post-pool (pool rows sum to 1 -> exact).
    c1 = pooled[:co, :] + b1      # main branch  (CNNModule conv -> pool)
    x1 = pooled[co:, :] + bres    # residual branch (conv_res -> pool)

    # --- stage 3: BatchNorm2d (training-mode batch stats) + LeakyReLU --------
    mean = jnp.mean(c1, axis=1, keepdims=True)
    diff = c1 - mean
    var = jnp.mean(diff * diff, axis=1, keepdims=True)                 # biased var
    h = diff * lax.rsqrt(var + BN_EPS) * gamma + beta
    h = jnp.where(h > 0, h, NEG_SLOPE * h)

    # --- stage 4: conv2 + LeakyReLU (fully VMEM/vreg resident) ---------------
    h = _conv3x3_roll(h, w23_ref[0], valid2_ref, w_out) + b2
    h = jnp.where(h > 0, h, NEG_SLOPE * h)

    # --- stage 5: conv3 + LeakyReLU + residual add ----------------------------
    h = _conv3x3_roll(h, w23_ref[1], valid2_ref, w_out) + b3
    h = jnp.where(h > 0, h, NEG_SLOPE * h)
    o_ref[...] = h + x1


# ------------------------------ public wrapper --------------------------------

def _conv_w_flat(w, ci_pad):
    """(O, I, 3, 3) OIHW conv weight -> (O, 9*ci_pad), columns ordered (tap, cin)."""
    o, i = w.shape[0], w.shape[1]
    wt = jnp.transpose(w, (0, 2, 3, 1))                     # (O, 3, 3, I)
    wt = jnp.pad(wt, ((0, 0), (0, 0), (0, 0), (0, ci_pad - i)))
    return wt.reshape(o, 9 * ci_pad)


def prepare_params(params):
    """One-time re-layout of module parameters into kernel form (outside jit)."""
    co, ci = params["w1"].shape[0], params["w1"].shape[1]
    ci_pad = _round_up8(ci)
    wm = jnp.concatenate([_conv_w_flat(params["w1"], ci_pad),
                          _conv_w_flat(params["wres"], ci_pad)], axis=0)  # (2Co, 9*ci_pad)
    w23 = jnp.stack([_conv_w_flat(params["w2"], co),
                     _conv_w_flat(params["w3"], co)], axis=0)             # (2, Co, 9*Co)
    smalls = jnp.stack([params["b1"], params["bres"], params["b2"],
                        params["b3"], params["gamma"], params["beta"]],
                       axis=1)                                            # (Co, 6)
    return dict(wm=wm, w23=w23, smalls=smalls)


@functools.partial(jax.jit, static_argnums=(2, 3))
def res_module_forward(x_nchw, prep, ho, wo):
    """Pallas implementation of ResModule.forward.  x_nchw: (N, Ci, H, W) -> NCHW out."""
    N, Ci, H, W = x_nchw.shape
    Co = prep["smalls"].shape[0]
    ci_pad = _round_up8(Ci)
    nhw, npix = N * H * W, N * ho * wo

    # trace-time numpy constants (baked into the executable, never recomputed)
    P2 = np.kron(_adaptive_pool_matrix(H, ho), _adaptive_pool_matrix(W, wo))
    poolT = np.zeros((nhw, npix), np.float32)       # block-diag over batch, transposed
    for n in range(N):
        poolT[n * H * W:(n + 1) * H * W, n * ho * wo:(n + 1) * ho * wo] = P2.T
    valid1 = _valid_tap_masks(N, H, W)              # (9, 1, N*H*W)   first conv
    valid2 = _valid_tap_masks(N, ho, wo)            # (9, 1, N*Ho*Wo) conv2 / conv3

    # lane-dense (Ci, N*H*W) input, channel dim padded to a sublane multiple
    x_t = jnp.transpose(x_nchw.astype(jnp.float32), (1, 0, 2, 3)).reshape(Ci, nhw)
    x_t = jnp.pad(x_t, ((0, ci_pad - Ci), (0, 0)))

    flops = (2 * (2 * Co) * (9 * ci_pad) * nhw      # merged conv1 / conv_res
             + 2 * (2 * Co) * nhw * npix            # adaptive avg pool matmul
             + 2 * 2 * Co * (9 * Co) * npix)        # conv2 + conv3
    bytes_accessed = 4 * (ci_pad * nhw + 2 * Co * 9 * ci_pad + 2 * Co * 9 * Co
                          + Co * 6 + 9 * nhw + 9 * npix + nhw * npix + Co * npix)

    vmem = pl.BlockSpec(memory_space=pltpu.MemorySpace.VMEM)
    out_t = pl.pallas_call(
        functools.partial(_res_module_kernel, w_in=W, w_out=wo),
        out_shape=jax.ShapeDtypeStruct((Co, npix), jnp.float32),
        in_specs=[vmem, vmem, vmem, vmem, vmem, vmem,
                  pl.BlockSpec(memory_space=pl.ANY)],      # poolT: manual DMA overlap
        out_specs=vmem,
        scratch_shapes=[pltpu.VMEM((nhw, npix), jnp.float32),
                        pltpu.SemaphoreType.DMA],
        cost_estimate=pl.CostEstimate(flops=flops, transcendentals=Co,
                                      bytes_accessed=bytes_accessed),
    )(x_t, prep["wm"], prep["w23"], prep["smalls"],
      jnp.asarray(valid1), jnp.asarray(valid2), jnp.asarray(poolT))

    # (Co, N*Ho*Wo) lane-dense kernel output -> NCHW
    return jnp.transpose(out_t.reshape(Co, N, ho, wo), (1, 0, 2, 3))


# --------------------------- pure-JAX reference -------------------------------

def _conv3x3_ref(x_nchw, w, b):
    y = lax.conv_general_dilated(x_nchw, w, (1, 1), ((1, 1), (1, 1)),
                                 dimension_numbers=("NCHW", "OIHW", "NCHW"))
    return y + b[None, :, None, None]


def _lrelu(x):
    return jnp.where(x > 0, x, NEG_SLOPE * x)


def _adaptive_pool_ref(x_nchw, ho, wo):
    Ph = jnp.asarray(_adaptive_pool_matrix(x_nchw.shape[2], ho))
    Pw = jnp.asarray(_adaptive_pool_matrix(x_nchw.shape[3], wo))
    return jnp.einsum("nchw,oh,pw->ncop", x_nchw, Ph, Pw)


def res_module_ref(x_nchw, params, ho, wo):
    x1 = _adaptive_pool_ref(_conv3x3_ref(x_nchw, params["wres"], params["bres"]),
                            ho, wo)
    h = _conv3x3_ref(x_nchw, params["w1"], params["b1"])
    h = _adaptive_pool_ref(h, ho, wo)
    mean = jnp.mean(h, axis=(0, 2, 3), keepdims=True)
    var = jnp.mean((h - mean) ** 2, axis=(0, 2, 3), keepdims=True)
    h = ((h - mean) * lax.rsqrt(var + BN_EPS)
         * params["gamma"][None, :, None, None]
         + params["beta"][None, :, None, None])
    h = _lrelu(h)
    h = _lrelu(_conv3x3_ref(h, params["w2"], params["b2"]))
    h = _lrelu(_conv3x3_ref(h, params["w3"], params["b3"]))
    return h + x1


# ---------------------------------- main --------------------------------------

if __name__ == "__main__":
    # ResModule(ci=4, co=8, hi=16, ho=8, wi=16, wo=8), batch N=2
    N, ci, co = 2, 4, 8
    hi, ho, wi, wo = 16, 8, 16, 8

    key = jax.random.PRNGKey(0)
    ks = jax.random.split(key, 9)

    def init_conv(kw, kb, c_out, c_in):
        bound = 1.0 / np.sqrt(c_in * 9)
        w = jax.random.uniform(kw, (c_out, c_in, 3, 3), jnp.float32, -bound, bound)
        b = jax.random.uniform(kb, (c_out,), jnp.float32, -bound, bound)
        return w, b

    w1, b1 = init_conv(ks[0], ks[1], co, ci)      # CNNModule conv
    w2, b2 = init_conv(ks[2], ks[3], co, co)      # main conv #2
    w3, b3 = init_conv(ks[4], ks[5], co, co)      # main conv #3
    wres, bres = init_conv(ks[6], ks[7], co, ci)  # residual conv

    params = dict(
        w1=w1, b1=b1, w2=w2, b2=b2, w3=w3, b3=b3, wres=wres, bres=bres,
        gamma=jnp.ones((co,), jnp.float32),        # BatchNorm2d default init
        beta=jnp.zeros((co,), jnp.float32),
    )

    x = jax.random.normal(ks[8], (N, ci, hi, wi), jnp.float32)

    prep = prepare_params(params)                  # one-time kernel-layout prep
    out = res_module_forward(x, prep, ho, wo)
    out = jax.block_until_ready(out)

    ref = jax.block_until_ready(res_module_ref(x, params, ho, wo))
    np.testing.assert_allclose(np.asarray(out), np.asarray(ref),
                               rtol=1e-4, atol=1e-4)

    assert out.shape == (N, co, ho, wo)
    print("KERNEL_OK")
</pallas_src>

<mosaic_0001>
module attributes {stable_mosaic.version = 11 : i64} {
  func.func @_res_module_kernel(%arg0: memref<8x512xf32, #tpu.memory_space<vmem>>, %arg1: memref<16x72xf32, #tpu.memory_space<vmem>>, %arg2: memref<2x8x72xf32, #tpu.memory_space<vmem>>, %arg3: memref<8x6xf32, #tpu.memory_space<vmem>>, %arg4: memref<9x1x512xf32, #tpu.memory_space<vmem>>, %arg5: memref<9x1x128xf32, #tpu.memory_space<vmem>>, %arg6: memref<512x128xf32, #tpu.memory_space<any>>, %arg7: memref<8x128xf32, #tpu.memory_space<vmem>>, %arg8: memref<512x128xf32, #tpu.memory_space<vmem>>, %arg9: memref<!tpu.dma_semaphore, #tpu.memory_space<semaphore_mem>>) attributes {dimension_semantics = [], scalar_prefetch = 0 : i64, scratch_operands = 2 : i64, tpu.core_type = #tpu.core_type<tc>} {
    tpu.enqueue_dma source(%arg6 : memref<512x128xf32, #tpu.memory_space<any>>) target(%arg8 : memref<512x128xf32, #tpu.memory_space<vmem>>) target_semaphore(%arg9 : memref<!tpu.dma_semaphore, #tpu.memory_space<semaphore_mem>>)
    %c0 = arith.constant 0 : index
    %c0_0 = arith.constant 0 : index
    %0 = vector.load %arg0[%c0, %c0_0] : memref<8x512xf32, #tpu.memory_space<vmem>>, vector<8x512xf32>
    %c0_1 = arith.constant 0 : index
    %c0_2 = arith.constant 0 : index
    %1 = vector.load %arg1[%c0_1, %c0_2] : memref<16x72xf32, #tpu.memory_space<vmem>>, vector<16x72xf32>
    %c17_i32 = arith.constant 17 : i32
    %2 = tpu.dynamic_rotate %0 by %c17_i32 dim 1 : vector<8x512xf32>, i32 -> vector<8x512xf32>
    %c0_3 = arith.constant 0 : index
    %c0_4 = arith.constant 0 : index
    %c0_5 = arith.constant 0 : index
    %3 = vector.load %arg4[%c0_3, %c0_4, %c0_5] : memref<9x1x512xf32, #tpu.memory_space<vmem>>, vector<1x1x512xf32>
    %4 = vector.shape_cast %3 : vector<1x1x512xf32> to vector<1x512xf32>
    %5 = vector.broadcast %4 : vector<1x512xf32> to vector<8x512xf32>
    %6 = arith.mulf %2, %5 : vector<8x512xf32>
    %c16_i32 = arith.constant 16 : i32
    %7 = tpu.dynamic_rotate %0 by %c16_i32 dim 1 : vector<8x512xf32>, i32 -> vector<8x512xf32>
    %c1 = arith.constant 1 : index
    %c0_6 = arith.constant 0 : index
    %c0_7 = arith.constant 0 : index
    %8 = vector.load %arg4[%c1, %c0_6, %c0_7] : memref<9x1x512xf32, #tpu.memory_space<vmem>>, vector<1x1x512xf32>
    %9 = vector.shape_cast %8 : vector<1x1x512xf32> to vector<1x512xf32>
    %10 = vector.broadcast %9 : vector<1x512xf32> to vector<8x512xf32>
    %11 = arith.mulf %7, %10 : vector<8x512xf32>
    %c15_i32 = arith.constant 15 : i32
    %12 = tpu.dynamic_rotate %0 by %c15_i32 dim 1 : vector<8x512xf32>, i32 -> vector<8x512xf32>
    %c2 = arith.constant 2 : index
    %c0_8 = arith.constant 0 : index
    %c0_9 = arith.constant 0 : index
    %13 = vector.load %arg4[%c2, %c0_8, %c0_9] : memref<9x1x512xf32, #tpu.memory_space<vmem>>, vector<1x1x512xf32>
    %14 = vector.shape_cast %13 : vector<1x1x512xf32> to vector<1x512xf32>
    %15 = vector.broadcast %14 : vector<1x512xf32> to vector<8x512xf32>
    %16 = arith.mulf %12, %15 : vector<8x512xf32>
    %c1_i32 = arith.constant 1 : i32
    %17 = tpu.dynamic_rotate %0 by %c1_i32 dim 1 : vector<8x512xf32>, i32 -> vector<8x512xf32>
    %c3 = arith.constant 3 : index
    %c0_10 = arith.constant 0 : index
    %c0_11 = arith.constant 0 : index
    %18 = vector.load %arg4[%c3, %c0_10, %c0_11] : memref<9x1x512xf32, #tpu.memory_space<vmem>>, vector<1x1x512xf32>
    %19 = vector.shape_cast %18 : vector<1x1x512xf32> to vector<1x512xf32>
    %20 = vector.broadcast %19 : vector<1x512xf32> to vector<8x512xf32>
    %21 = arith.mulf %17, %20 : vector<8x512xf32>
    %c511_i32 = arith.constant 511 : i32
    %22 = tpu.dynamic_rotate %0 by %c511_i32 dim 1 : vector<8x512xf32>, i32 -> vector<8x512xf32>
    %c5 = arith.constant 5 : index
    %c0_12 = arith.constant 0 : index
    %c0_13 = arith.constant 0 : index
    %23 = vector.load %arg4[%c5, %c0_12, %c0_13] : memref<9x1x512xf32, #tpu.memory_space<vmem>>, vector<1x1x512xf32>
    %24 = vector.shape_cast %23 : vector<1x1x512xf32> to vector<1x512xf32>
    %25 = vector.broadcast %24 : vector<1x512xf32> to vector<8x512xf32>
    %26 = arith.mulf %22, %25 : vector<8x512xf32>
    %c497_i32 = arith.constant 497 : i32
    %27 = tpu.dynamic_rotate %0 by %c497_i32 dim 1 : vector<8x512xf32>, i32 -> vector<8x512xf32>
    %c6 = arith.constant 6 : index
    %c0_14 = arith.constant 0 : index
    %c0_15 = arith.constant 0 : index
    %28 = vector.load %arg4[%c6, %c0_14, %c0_15] : memref<9x1x512xf32, #tpu.memory_space<vmem>>, vector<1x1x512xf32>
    %29 = vector.shape_cast %28 : vector<1x1x512xf32> to vector<1x512xf32>
    %30 = vector.broadcast %29 : vector<1x512xf32> to vector<8x512xf32>
    %31 = arith.mulf %27, %30 : vector<8x512xf32>
    %c496_i32 = arith.constant 496 : i32
    %32 = tpu.dynamic_rotate %0 by %c496_i32 dim 1 : vector<8x512xf32>, i32 -> vector<8x512xf32>
    %c7 = arith.constant 7 : index
    %c0_16 = arith.constant 0 : index
    %c0_17 = arith.constant 0 : index
    %33 = vector.load %arg4[%c7, %c0_16, %c0_17] : memref<9x1x512xf32, #tpu.memory_space<vmem>>, vector<1x1x512xf32>
    %34 = vector.shape_cast %33 : vector<1x1x512xf32> to vector<1x512xf32>
    %35 = vector.broadcast %34 : vector<1x512xf32> to vector<8x512xf32>
    %36 = arith.mulf %32, %35 : vector<8x512xf32>
    %c495_i32 = arith.constant 495 : i32
    %37 = tpu.dynamic_rotate %0 by %c495_i32 dim 1 : vector<8x512xf32>, i32 -> vector<8x512xf32>
    %c8 = arith.constant 8 : index
    %c0_18 = arith.constant 0 : index
    %c0_19 = arith.constant 0 : index
    %38 = vector.load %arg4[%c8, %c0_18, %c0_19] : memref<9x1x512xf32, #tpu.memory_space<vmem>>, vector<1x1x512xf32>
    %39 = vector.shape_cast %38 : vector<1x1x512xf32> to vector<1x512xf32>
    %40 = vector.broadcast %39 : vector<1x512xf32> to vector<8x512xf32>
    %41 = arith.mulf %37, %40 : vector<8x512xf32>
    %42 = tpu.concatenate %6, %11, %16, %21, %0, %26, %31, %36, %41 in 0 : vector<8x512xf32>, vector<8x512xf32>, vector<8x512xf32>, vector<8x512xf32>, vector<8x512xf32>, vector<8x512xf32>, vector<8x512xf32>, vector<8x512xf32>, vector<8x512xf32> -> vector<72x512xf32>
    %cst = arith.constant dense<0.000000e+00> : vector<16x512xf32>
    %43 = tpu.matmul %1, %42, %cst {dimension_numbers = #tpu.dot_dimension_numbers<[1], [0], [0], [1], [0, 0, 1, 1], [], []>} : vector<16x72xf32>, vector<72x512xf32>, vector<16x512xf32> -> vector<16x512xf32>
    tpu.wait_dma2 semaphore(%arg9 : memref<!tpu.dma_semaphore, #tpu.memory_space<semaphore_mem>>) src(%arg6 : memref<512x128xf32, #tpu.memory_space<any>>) dst(%arg8 : memref<512x128xf32, #tpu.memory_space<vmem>>)
    %c0_20 = arith.constant 0 : index
    %c0_21 = arith.constant 0 : index
    %44 = vector.load %arg8[%c0_20, %c0_21] : memref<512x128xf32, #tpu.memory_space<vmem>>, vector<512x128xf32>
    %cst_22 = arith.constant dense<0.000000e+00> : vector<16x128xf32>
    %45 = tpu.matmul %43, %44, %cst_22 {dimension_numbers = #tpu.dot_dimension_numbers<[1], [0], [0], [1], [0, 0, 1, 1], [], []>} : vector<16x512xf32>, vector<512x128xf32>, vector<16x128xf32> -> vector<16x128xf32>
    %c0_23 = arith.constant 0 : index
    %c0_24 = arith.constant 0 : index
    %46 = vector.load %arg3[%c0_23, %c0_24] : memref<8x6xf32, #tpu.memory_space<vmem>>, vector<8x1xf32>
    %c0_25 = arith.constant 0 : index
    %c1_26 = arith.constant 1 : index
    %47 = vector.load %arg3[%c0_25, %c1_26] : memref<8x6xf32, #tpu.memory_space<vmem>>, vector<8x1xf32>
    %c0_27 = arith.constant 0 : index
    %c2_28 = arith.constant 2 : index
    %48 = vector.load %arg3[%c0_27, %c2_28] : memref<8x6xf32, #tpu.memory_space<vmem>>, vector<8x1xf32>
    %c0_29 = arith.constant 0 : index
    %c3_30 = arith.constant 3 : index
    %49 = vector.load %arg3[%c0_29, %c3_30] : memref<8x6xf32, #tpu.memory_space<vmem>>, vector<8x1xf32>
    %c0_31 = arith.constant 0 : index
    %c4 = arith.constant 4 : index
    %50 = vector.load %arg3[%c0_31, %c4] : memref<8x6xf32, #tpu.memory_space<vmem>>, vector<8x1xf32>
    %c0_32 = arith.constant 0 : index
    %c5_33 = arith.constant 5 : index
    %51 = vector.load %arg3[%c0_32, %c5_33] : memref<8x6xf32, #tpu.memory_space<vmem>>, vector<8x1xf32>
    %52 = vector.extract_strided_slice %45 {offsets = [0, 0], sizes = [8, 128], strides = [1, 1]} : vector<16x128xf32> to vector<8x128xf32>
    %53 = vector.broadcast %46 : vector<8x1xf32> to vector<8x128xf32>
    %54 = arith.addf %52, %53 : vector<8x128xf32>
    %55 = vector.extract_strided_slice %45 {offsets = [8, 0], sizes = [8, 128], strides = [1, 1]} : vector<16x128xf32> to vector<8x128xf32>
    %56 = vector.broadcast %47 : vector<8x1xf32> to vector<8x128xf32>
    %57 = arith.addf %55, %56 : vector<8x128xf32>
    %cst_34 = arith.constant dense<0.000000e+00> : vector<8xf32>
    %58 = vector.multi_reduction <add>, %54, %cst_34 [1] : vector<8x128xf32> to vector<8xf32>
    %59 = vector.shape_cast %58 : vector<8xf32> to vector<8x1xf32>
    %cst_35 = arith.constant 1.280000e+02 : f32
    %60 = vector.broadcast %cst_35 : f32 to vector<8x1xf32>
    %61 = arith.divf %59, %60 : vector<8x1xf32>
    %62 = vector.broadcast %61 : vector<8x1xf32> to vector<8x128xf32>
    %63 = arith.subf %54, %62 : vector<8x128xf32>
    %64 = arith.mulf %63, %63 : vector<8x128xf32>
    %cst_36 = arith.constant dense<0.000000e+00> : vector<8xf32>
    %65 = vector.multi_reduction <add>, %64, %cst_36 [1] : vector<8x128xf32> to vector<8xf32>
    %66 = vector.shape_cast %65 : vector<8xf32> to vector<8x1xf32>
    %cst_37 = arith.constant 1.280000e+02 : f32
    %67 = vector.broadcast %cst_37 : f32 to vector<8x1xf32>
    %68 = arith.divf %66, %67 : vector<8x1xf32>
    %cst_38 = arith.constant 9.99999974E-6 : f32
    %69 = vector.broadcast %cst_38 : f32 to vector<8x1xf32>
    %70 = arith.addf %68, %69 : vector<8x1xf32>
    %71 = math.rsqrt %70 : vector<8x1xf32>
    %72 = vector.broadcast %71 : vector<8x1xf32> to vector<8x128xf32>
    %73 = arith.mulf %63, %72 : vector<8x128xf32>
    %74 = vector.broadcast %50 : vector<8x1xf32> to vector<8x128xf32>
    %75 = arith.mulf %73, %74 : vector<8x128xf32>
    %76 = vector.broadcast %51 : vector<8x1xf32> to vector<8x128xf32>
    %77 = arith.addf %75, %76 : vector<8x128xf32>
    %cst_39 = arith.constant 0.000000e+00 : f32
    %78 = vector.broadcast %cst_39 : f32 to vector<8x128xf32>
    %79 = arith.cmpf ogt, %77, %78 : vector<8x128xf32>
    %cst_40 = arith.constant 0.00999999977 : f32
    %80 = vector.broadcast %cst_40 : f32 to vector<8x128xf32>
    %81 = arith.mulf %80, %77 : vector<8x128xf32>
    %82 = arith.select %79, %77, %81 : vector<8x128xi1>, vector<8x128xf32>
    %c0_41 = arith.constant 0 : index
    %c0_42 = arith.constant 0 : index
    %c0_43 = arith.constant 0 : index
    %83 = vector.load %arg2[%c0_41, %c0_42, %c0_43] : memref<2x8x72xf32, #tpu.memory_space<vmem>>, vector<1x8x72xf32>
    %84 = vector.shape_cast %83 : vector<1x8x72xf32> to vector<8x72xf32>
    %c9_i32 = arith.constant 9 : i32
    %85 = tpu.dynamic_rotate %82 by %c9_i32 dim 1 : vector<8x128xf32>, i32 -> vector<8x128xf32>
    %c0_44 = arith.constant 0 : index
    %c0_45 = arith.constant 0 : index
    %c0_46 = arith.constant 0 : index
    %86 = vector.load %arg5[%c0_44, %c0_45, %c0_46] : memref<9x1x128xf32, #tpu.memory_space<vmem>>, vector<1x1x128xf32>
    %87 = vector.shape_cast %86 : vector<1x1x128xf32> to vector<1x128xf32>
    %88 = vector.broadcast %87 : vector<1x128xf32> to vector<8x128xf32>
    %89 = arith.mulf %85, %88 : vector<8x128xf32>
    %c8_i32 = arith.constant 8 : i32
    %90 = tpu.dynamic_rotate %82 by %c8_i32 dim 1 : vector<8x128xf32>, i32 -> vector<8x128xf32>
    %c1_47 = arith.constant 1 : index
    %c0_48 = arith.constant 0 : index
    %c0_49 = arith.constant 0 : index
    %91 = vector.load %arg5[%c1_47, %c0_48, %c0_49] : memref<9x1x128xf32, #tpu.memory_space<vmem>>, vector<1x1x128xf32>
    %92 = vector.shape_cast %91 : vector<1x1x128xf32> to vector<1x128xf32>
    %93 = vector.broadcast %92 : vector<1x128xf32> to vector<8x128xf32>
    %94 = arith.mulf %90, %93 : vector<8x128xf32>
    %c7_i32 = arith.constant 7 : i32
    %95 = tpu.dynamic_rotate %82 by %c7_i32 dim 1 : vector<8x128xf32>, i32 -> vector<8x128xf32>
    %c2_50 = arith.constant 2 : index
    %c0_51 = arith.constant 0 : index
    %c0_52 = arith.constant 0 : index
    %96 = vector.load %arg5[%c2_50, %c0_51, %c0_52] : memref<9x1x128xf32, #tpu.memory_space<vmem>>, vector<1x1x128xf32>
    %97 = vector.shape_cast %96 : vector<1x1x128xf32> to vector<1x128xf32>
    %98 = vector.broadcast %97 : vector<1x128xf32> to vector<8x128xf32>
    %99 = arith.mulf %95, %98 : vector<8x128xf32>
    %c1_i32_53 = arith.constant 1 : i32
    %100 = tpu.dynamic_rotate %82 by %c1_i32_53 dim 1 : vector<8x128xf32>, i32 -> vector<8x128xf32>
    %c3_54 = arith.constant 3 : index
    %c0_55 = arith.constant 0 : index
    %c0_56 = arith.constant 0 : index
    %101 = vector.load %arg5[%c3_54, %c0_55, %c0_56] : memref<9x1x128xf32, #tpu.memory_space<vmem>>, vector<1x1x128xf32>
    %102 = vector.shape_cast %101 : vector<1x1x128xf32> to vector<1x128xf32>
    %103 = vector.broadcast %102 : vector<1x128xf32> to vector<8x128xf32>
    %104 = arith.mulf %100, %103 : vector<8x128xf32>
    %c127_i32 = arith.constant 127 : i32
    %105 = tpu.dynamic_rotate %82 by %c127_i32 dim 1 : vector<8x128xf32>, i32 -> vector<8x128xf32>
    %c5_57 = arith.constant 5 : index
    %c0_58 = arith.constant 0 : index
    %c0_59 = arith.constant 0 : index
    %106 = vector.load %arg5[%c5_57, %c0_58, %c0_59] : memref<9x1x128xf32, #tpu.memory_space<vmem>>, vector<1x1x128xf32>
    %107 = vector.shape_cast %106 : vector<1x1x128xf32> to vector<1x128xf32>
    %108 = vector.broadcast %107 : vector<1x128xf32> to vector<8x128xf32>
    %109 = arith.mulf %105, %108 : vector<8x128xf32>
    %c121_i32 = arith.constant 121 : i32
    %110 = tpu.dynamic_rotate %82 by %c121_i32 dim 1 : vector<8x128xf32>, i32 -> vector<8x128xf32>
    %c6_60 = arith.constant 6 : index
    %c0_61 = arith.constant 0 : index
    %c0_62 = arith.constant 0 : index
    %111 = vector.load %arg5[%c6_60, %c0_61, %c0_62] : memref<9x1x128xf32, #tpu.memory_space<vmem>>, vector<1x1x128xf32>
    %112 = vector.shape_cast %111 : vector<1x1x128xf32> to vector<1x128xf32>
    %113 = vector.broadcast %112 : vector<1x128xf32> to vector<8x128xf32>
    %114 = arith.mulf %110, %113 : vector<8x128xf32>
    %c120_i32 = arith.constant 120 : i32
    %115 = tpu.dynamic_rotate %82 by %c120_i32 dim 1 : vector<8x128xf32>, i32 -> vector<8x128xf32>
    %c7_63 = arith.constant 7 : index
    %c0_64 = arith.constant 0 : index
    %c0_65 = arith.constant 0 : index
    %116 = vector.load %arg5[%c7_63, %c0_64, %c0_65] : memref<9x1x128xf32, #tpu.memory_space<vmem>>, vector<1x1x128xf32>
    %117 = vector.shape_cast %116 : vector<1x1x128xf32> to vector<1x128xf32>
    %118 = vector.broadcast %117 : vector<1x128xf32> to vector<8x128xf32>
    %119 = arith.mulf %115, %118 : vector<8x128xf32>
    %c119_i32 = arith.constant 119 : i32
    %120 = tpu.dynamic_rotate %82 by %c119_i32 dim 1 : vector<8x128xf32>, i32 -> vector<8x128xf32>
    %c8_66 = arith.constant 8 : index
    %c0_67 = arith.constant 0 : index
    %c0_68 = arith.constant 0 : index
    %121 = vector.load %arg5[%c8_66, %c0_67, %c0_68] : memref<9x1x128xf32, #tpu.memory_space<vmem>>, vector<1x1x128xf32>
    %122 = vector.shape_cast %121 : vector<1x1x128xf32> to vector<1x128xf32>
    %123 = vector.broadcast %122 : vector<1x128xf32> to vector<8x128xf32>
    %124 = arith.mulf %120, %123 : vector<8x128xf32>
    %125 = tpu.concatenate %89, %94, %99, %104, %82, %109, %114, %119, %124 in 0 : vector<8x128xf32>, vector<8x128xf32>, vector<8x128xf32>, vector<8x128xf32>, vector<8x128xf32>, vector<8x128xf32>, vector<8x128xf32>, vector<8x128xf32>, vector<8x128xf32> -> vector<72x128xf32>
    %cst_69 = arith.constant dense<0.000000e+00> : vector<8x128xf32>
    %126 = tpu.matmul %84, %125, %cst_69 {dimension_numbers = #tpu.dot_dimension_numbers<[1], [0], [0], [1], [0, 0, 1, 1], [], []>} : vector<8x72xf32>, vector<72x128xf32>, vector<8x128xf32> -> vector<8x128xf32>
    %127 = vector.broadcast %48 : vector<8x1xf32> to vector<8x128xf32>
    %128 = arith.addf %126, %127 : vector<8x128xf32>
    %cst_70 = arith.constant 0.000000e+00 : f32
    %129 = vector.broadcast %cst_70 : f32 to vector<8x128xf32>
    %130 = arith.cmpf ogt, %128, %129 : vector<8x128xf32>
    %cst_71 = arith.constant 0.00999999977 : f32
    %131 = vector.broadcast %cst_71 : f32 to vector<8x128xf32>
    %132 = arith.mulf %131, %128 : vector<8x128xf32>
    %133 = arith.select %130, %128, %132 : vector<8x128xi1>, vector<8x128xf32>
    %c1_72 = arith.constant 1 : index
    %c0_73 = arith.constant 0 : index
    %c0_74 = arith.constant 0 : index
    %134 = vector.load %arg2[%c1_72, %c0_73, %c0_74] : memref<2x8x72xf32, #tpu.memory_space<vmem>>, vector<1x8x72xf32>
    %135 = vector.shape_cast %134 : vector<1x8x72xf32> to vector<8x72xf32>
    %c9_i32_75 = arith.constant 9 : i32
    %136 = tpu.dynamic_rotate %133 by %c9_i32_75 dim 1 : vector<8x128xf32>, i32 -> vector<8x128xf32>
    %c0_76 = arith.constant 0 : index
    %c0_77 = arith.constant 0 : index
    %c0_78 = arith.constant 0 : index
    %137 = vector.load %arg5[%c0_76, %c0_77, %c0_78] : memref<9x1x128xf32, #tpu.memory_space<vmem>>, vector<1x1x128xf32>
    %138 = vector.shape_cast %137 : vector<1x1x128xf32> to vector<1x128xf32>
    %139 = vector.broadcast %138 : vector<1x128xf32> to vector<8x128xf32>
    %140 = arith.mulf %136, %139 : vector<8x128xf32>
    %c8_i32_79 = arith.constant 8 : i32
    %141 = tpu.dynamic_rotate %133 by %c8_i32_79 dim 1 : vector<8x128xf32>, i32 -> vector<8x128xf32>
    %c1_80 = arith.constant 1 : index
    %c0_81 = arith.constant 0 : index
    %c0_82 = arith.constant 0 : index
    %142 = vector.load %arg5[%c1_80, %c0_81, %c0_82] : memref<9x1x128xf32, #tpu.memory_space<vmem>>, vector<1x1x128xf32>
    %143 = vector.shape_cast %142 : vector<1x1x128xf32> to vector<1x128xf32>
    %144 = vector.broadcast %143 : vector<1x128xf32> to vector<8x128xf32>
    %145 = arith.mulf %141, %144 : vector<8x128xf32>
    %c7_i32_83 = arith.constant 7 : i32
    %146 = tpu.dynamic_rotate %133 by %c7_i32_83 dim 1 : vector<8x128xf32>, i32 -> vector<8x128xf32>
    %c2_84 = arith.constant 2 : index
    %c0_85 = arith.constant 0 : index
    %c0_86 = arith.constant 0 : index
    %147 = vector.load %arg5[%c2_84, %c0_85, %c0_86] : memref<9x1x128xf32, #tpu.memory_space<vmem>>, vector<1x1x128xf32>
    %148 = vector.shape_cast %147 : vector<1x1x128xf32> to vector<1x128xf32>
    %149 = vector.broadcast %148 : vector<1x128xf32> to vector<8x128xf32>
    %150 = arith.mulf %146, %149 : vector<8x128xf32>
    %c1_i32_87 = arith.constant 1 : i32
    %151 = tpu.dynamic_rotate %133 by %c1_i32_87 dim 1 : vector<8x128xf32>, i32 -> vector<8x128xf32>
    %c3_88 = arith.constant 3 : index
    %c0_89 = arith.constant 0 : index
    %c0_90 = arith.constant 0 : index
    %152 = vector.load %arg5[%c3_88, %c0_89, %c0_90] : memref<9x1x128xf32, #tpu.memory_space<vmem>>, vector<1x1x128xf32>
    %153 = vector.shape_cast %152 : vector<1x1x128xf32> to vector<1x128xf32>
    %154 = vector.broadcast %153 : vector<1x128xf32> to vector<8x128xf32>
    %155 = arith.mulf %151, %154 : vector<8x128xf32>
    %c127_i32_91 = arith.constant 127 : i32
    %156 = tpu.dynamic_rotate %133 by %c127_i32_91 dim 1 : vector<8x128xf32>, i32 -> vector<8x128xf32>
    %c5_92 = arith.constant 5 : index
    %c0_93 = arith.constant 0 : index
    %c0_94 = arith.constant 0 : index
    %157 = vector.load %arg5[%c5_92, %c0_93, %c0_94] : memref<9x1x128xf32, #tpu.memory_space<vmem>>, vector<1x1x128xf32>
    %158 = vector.shape_cast %157 : vector<1x1x128xf32> to vector<1x128xf32>
    %159 = vector.broadcast %158 : vector<1x128xf32> to vector<8x128xf32>
    %160 = arith.mulf %156, %159 : vector<8x128xf32>
    %c121_i32_95 = arith.constant 121 : i32
    %161 = tpu.dynamic_rotate %133 by %c121_i32_95 dim 1 : vector<8x128xf32>, i32 -> vector<8x128xf32>
    %c6_96 = arith.constant 6 : index
    %c0_97 = arith.constant 0 : index
    %c0_98 = arith.constant 0 : index
    %162 = vector.load %arg5[%c6_96, %c0_97, %c0_98] : memref<9x1x128xf32, #tpu.memory_space<vmem>>, vector<1x1x128xf32>
    %163 = vector.shape_cast %162 : vector<1x1x128xf32> to vector<1x128xf32>
    %164 = vector.broadcast %163 : vector<1x128xf32> to vector<8x128xf32>
    %165 = arith.mulf %161, %164 : vector<8x128xf32>
    %c120_i32_99 = arith.constant 120 : i32
    %166 = tpu.dynamic_rotate %133 by %c120_i32_99 dim 1 : vector<8x128xf32>, i32 -> vector<8x128xf32>
    %c7_100 = arith.constant 7 : index
    %c0_101 = arith.constant 0 : index
    %c0_102 = arith.constant 0 : index
    %167 = vector.load %arg5[%c7_100, %c0_101, %c0_102] : memref<9x1x128xf32, #tpu.memory_space<vmem>>, vector<1x1x128xf32>
    %168 = vector.shape_cast %167 : vector<1x1x128xf32> to vector<1x128xf32>
    %169 = vector.broadcast %168 : vector<1x128xf32> to vector<8x128xf32>
    %170 = arith.mulf %166, %169 : vector<8x128xf32>
    %c119_i32_103 = arith.constant 119 : i32
    %171 = tpu.dynamic_rotate %133 by %c119_i32_103 dim 1 : vector<8x128xf32>, i32 -> vector<8x128xf32>
    %c8_104 = arith.constant 8 : index
    %c0_105 = arith.constant 0 : index
    %c0_106 = arith.constant 0 : index
    %172 = vector.load %arg5[%c8_104, %c0_105, %c0_106] : memref<9x1x128xf32, #tpu.memory_space<vmem>>, vector<1x1x128xf32>
    %173 = vector.shape_cast %172 : vector<1x1x128xf32> to vector<1x128xf32>
    %174 = vector.broadcast %173 : vector<1x128xf32> to vector<8x128xf32>
    %175 = arith.mulf %171, %174 : vector<8x128xf32>
    %176 = tpu.concatenate %140, %145, %150, %155, %133, %160, %165, %170, %175 in 0 : vector<8x128xf32>, vector<8x128xf32>, vector<8x128xf32>, vector<8x128xf32>, vector<8x128xf32>, vector<8x128xf32>, vector<8x128xf32>, vector<8x128xf32>, vector<8x128xf32> -> vector<72x128xf32>
    %cst_107 = arith.constant dense<0.000000e+00> : vector<8x128xf32>
    %177 = tpu.matmul %135, %176, %cst_107 {dimension_numbers = #tpu.dot_dimension_numbers<[1], [0], [0], [1], [0, 0, 1, 1], [], []>} : vector<8x72xf32>, vector<72x128xf32>, vector<8x128xf32> -> vector<8x128xf32>
    %178 = vector.broadcast %49 : vector<8x1xf32> to vector<8x128xf32>
    %179 = arith.addf %177, %178 : vector<8x128xf32>
    %cst_108 = arith.constant 0.000000e+00 : f32
    %180 = vector.broadcast %cst_108 : f32 to vector<8x128xf32>
    %181 = arith.cmpf ogt, %179, %180 : vector<8x128xf32>
    %cst_109 = arith.constant 0.00999999977 : f32
    %182 = vector.broadcast %cst_109 : f32 to vector<8x128xf32>
    %183 = arith.mulf %182, %179 : vector<8x128xf32>
    %184 = arith.select %181, %179, %183 : vector<8x128xi1>, vector<8x128xf32>
    %185 = arith.addf %184, %57 : vector<8x128xf32>
    %c0_110 = arith.constant 0 : index
    %c0_111 = arith.constant 0 : index
    %186 = vector.load %arg7[%c0_110, %c0_111] : memref<8x128xf32, #tpu.memory_space<vmem>>, vector<8x128xf32>
    tpu.vector_store %arg7[%c0_110, %c0_111], %185 {strides = array<i32>} : memref<8x128xf32, #tpu.memory_space<vmem>>, vector<8x128xf32>,
    return
  }
}

</mosaic_0001>

<llo_original>
// kernel: res_module_forward.1
$region0: #{res_module_forward.1}
  #allocation0 [shape = 'u32[]', space=smem, size = 0x4, offset = 0x4, fixed_abs, tag = 'smem constant byte address 0x4 - core index']
  #allocation1 [shape = 'u32[144,128]{1,0:T(1,128)}', space=vmem, size = 0x12000, scoped, tag = 'internal scratch']
  #allocation2 [shape = 'f32[512,128]{1,0:T(8,128)}', space=vmem, size = 0x40000, scoped, tag = 'scratch operand']
  #allocation3 [shape = 's32[1]{0}', space=sflag, size = 0x4, scoped, tag = 'scratch operand']
  #allocation4 [shape = 's32[]', space=sflag, size = 0x4, offset = 0, fixed_abs, tag = 'sflag constant byte address 0x0 - dummy sync flag']
  #allocation5 [shape = 's32[]', space=sflag, size = 0x4, offset = 0, fixed_abs, tag = 'sflag constant byte address 0x0 - dummy sync flag']
  #allocation6 [shape = 'u32[]', space=smem, size = 0x4, offset = 0x44, fixed_abs, tag = 'smem constant byte address 0x44 - assertion arg 0']
  #allocation7 [shape = 'u32[]', space=smem, size = 0x4, offset = 0x48, fixed_abs, tag = 'smem constant byte address 0x48 - assertion arg 1']
  %s0 = inlined_call_operand.vmem [shape: f32[8,512], index: 0, kind: input, shape index: {}]
  %s1 = inlined_call_operand.vmem [shape: f32[16,72], index: 1, kind: input, shape index: {}]
  %s2 = inlined_call_operand.vmem [shape: f32[2,8,72], index: 2, kind: input, shape index: {}]
  %s3 = inlined_call_operand.vmem [shape: f32[8,6], index: 3, kind: input, shape index: {}]
  %s4 = inlined_call_operand.vmem [shape: f32[9,1,512], index: 4, kind: input, shape index: {}]
  %s5 = inlined_call_operand.vmem [shape: f32[9,1,128], index: 5, kind: input, shape index: {}]
  %s6 = inlined_call_operand.hbm [shape: f32[512,128], index: 6, kind: input, shape index: {}]
  %s7 = inlined_call_operand.vmem [shape: f32[8,128], index: 7, kind: output, shape index: {}]
  %s8 = sld [smem:[#allocation0]]
  $region38: #{res_module_forward.1} parent=0
    _
  %s10 = ssub.s32 1, %s8
  %s11 = scalar_select 0, %s10, %s8
  // Predicated region
  $region2: #{res_module_forward.1} parent=0 // pred_check
    _
  $region3: #{res_module_forward.1} parent=0 // pred_check_branch
    %13 = sbr.rel (0) target = $region5
  $region4: #{res_module_forward.1} parent=0 // pred_region
    _
  $region5: #{res_module_forward.1} parent=0 // pred_fallthru
    _
  // Predicated region
  $region6: #{res_module_forward.1} parent=0 // pred_check
    _
  $region7: #{res_module_forward.1} parent=0 // pred_check_branch
    %15 = sbr.rel (0) target = $region9
  $region8: #{res_module_forward.1} parent=0 // pred_region
    _
  $region9: #{res_module_forward.1} parent=0 // pred_fallthru
    _
  // Predicated region
  $region10: #{res_module_forward.1} parent=0 // pred_check
    _
  $region11: #{res_module_forward.1} parent=0 // pred_check_branch
    %17 = sbr.rel (0) target = $region13
  $region12: #{res_module_forward.1} parent=0 // pred_region
    _
  $region13: #{res_module_forward.1} parent=0 // pred_fallthru
    _
  // Predicated region
  $region14: #{res_module_forward.1} parent=0 // pred_check
    _
  $region15: #{res_module_forward.1} parent=0 // pred_check_branch
    %19 = sbr.rel (0) target = $region17
  $region16: #{res_module_forward.1} parent=0 // pred_region
    _
  $region17: #{res_module_forward.1} parent=0 // pred_fallthru
    _
  // Predicated region
  $region18: #{res_module_forward.1} parent=0 // pred_check
    _
  $region19: #{res_module_forward.1} parent=0 // pred_check_branch
    %21 = sbr.rel (0) target = $region21
  $region20: #{res_module_forward.1} parent=0 // pred_region
    _
  $region21: #{res_module_forward.1} parent=0 // pred_fallthru
    _
  // Predicated region
  $region22: #{res_module_forward.1} parent=0 // pred_check
    _
  $region23: #{res_module_forward.1} parent=0 // pred_check_branch
    %23 = sbr.rel (0) target = $region25
  $region24: #{res_module_forward.1} parent=0 // pred_region
    _
  $region25: #{res_module_forward.1} parent=0 // pred_fallthru
    _
  // Predicated region
  $region26: #{res_module_forward.1} parent=0 // pred_check
    _
  $region27: #{res_module_forward.1} parent=0 // pred_check_branch
    %25 = sbr.rel target = $region29
  $region28: #{res_module_forward.1} parent=0 // pred_region
    %26 = sst [smem:[#allocation6]] [#allocation5]
    %27 = sst [smem:[#allocation7]] [#allocation4]
  $region29: #{res_module_forward.1} parent=0 // pred_fallthru
    _
  %29 = shalt.err (0)
  %s31 = sshll.u32 [#allocation2], 4
  %s32 = int_to_ptr.vmem [resolvable:$true] %s31
  %34 = dma.hbm_to_vmem [thread:$0]  %s6, 8192, %s32, [#allocation3]
  %v35 = vld [vmem:[%s0] sm:$0xff]
  %v36 = vld [vmem:[%s0 + $0x8] sm:$0xff]
  %v37 = vld [vmem:[%s0 + $0x10] sm:$0xff]
  %v38 = vld [vmem:[%s0 + $0x18] sm:$0xff]
  %v39 = vld [vmem:[%s1] sm:$0xff]
  %v40 = vld [vmem:[%s1 + $0x8] sm:$0xff]
  %41 = vrot.lane.b32.xlu0 %v35, 17
  %v42 = vpop.permute.xlu0 %41
  %43 = vrot.lane.b32.xlu0 %v36, 17
  %v44 = vpop.permute.xlu0 %43
  %45 = vrot.lane.b32.xlu0 %v37, 17
  %v46 = vpop.permute.xlu0 %45
  %47 = vrot.lane.b32.xlu0 %v38, 17
  %v48 = vpop.permute.xlu0 %47
  %v49 = vlaneseq
  %v50 = vand.u32 %v49, 127
  %vm51 = vcmp.lt.s32.totalorder %v50, 17
  %v52 = vsel %vm51, %v46, %v48
  %v53 = vsel %vm51, %v44, %v46
  %v54 = vsel %vm51, %v42, %v44
  %v55 = vsel %vm51, %v48, %v42
  %v56 = vld [vmem:[%s4] sm:$0xf]
  %v58 = vlaneseq
  %v59 = vshrl.u32 %v58, 7
  %v60 = vsub.s32 0, %v59
  %v61 = vrot.slane %v56, %v60
  %v62 = vlaneseq
  %v63 = vshrl.u32 %v62, 7
  %v64 = vsub.s32 1, %v63
  %v65 = vrot.slane %v56, %v64
  %v66 = vlaneseq
  %v67 = vshrl.u32 %v66, 7
  %v68 = vsub.s32 2, %v67
  %v69 = vrot.slane %v56, %v68
  %v70 = vlaneseq
  %v71 = vshrl.u32 %v70, 7
  %v72 = vsub.s32 3, %v71
  %v73 = vrot.slane %v56, %v72
  %v78 = vmul.f32 %v55, %v61
  %v79 = vmul.f32 %v54, %v65
  %v80 = vmul.f32 %v53, %v69
  %v81 = vmul.f32 %v52, %v73
  %82 = vrot.lane.b32.xlu0 %v35, 16
  %v83 = vpop.permute.xlu0 %82
  %84 = vrot.lane.b32.xlu0 %v36, 16
  %v85 = vpop.permute.xlu0 %84
  %86 = vrot.lane.b32.xlu0 %v37, 16
  %v87 = vpop.permute.xlu0 %86
  %88 = vrot.lane.b32.xlu0 %v38, 16
  %v89 = vpop.permute.xlu0 %88
  %vm90 = vcmp.lt.s32.totalorder %v50, 16
  %v91 = vsel %vm90, %v87, %v89
  %v92 = vsel %vm90, %v85, %v87
  %v93 = vsel %vm90, %v83, %v85
  %v94 = vsel %vm90, %v89, %v83
  %s95 = scalar_lea.vmem %s4, 4
  %v96 = vld [vmem:[%s95] sm:$0xf]
  %v98 = vlaneseq
  %v99 = vshrl.u32 %v98, 7
  %v100 = vsub.s32 0, %v99
  %v101 = vrot.slane %v96, %v100
  %v102 = vlaneseq
  %v103 = vshrl.u32 %v102, 7
  %v104 = vsub.s32 1, %v103
  %v105 = vrot.slane %v96, %v104
  %v106 = vlaneseq
  %v107 = vshrl.u32 %v106, 7
  %v108 = vsub.s32 2, %v107
  %v109 = vrot.slane %v96, %v108
  %v110 = vlaneseq
  %v111 = vshrl.u32 %v110, 7
  %v112 = vsub.s32 3, %v111
  %v113 = vrot.slane %v96, %v112
  %v118 = vmul.f32 %v94, %v101
  %v119 = vmul.f32 %v93, %v105
  %v120 = vmul.f32 %v92, %v109
  %v121 = vmul.f32 %v91, %v113
  %122 = vrot.lane.b32.xlu0 %v35, 15
  %v123 = vpop.permute.xlu0 %122
  %124 = vrot.lane.b32.xlu0 %v36, 15
  %v125 = vpop.permute.xlu0 %124
  %126 = vrot.lane.b32.xlu0 %v37, 15
  %v127 = vpop.permute.xlu0 %126
  %128 = vrot.lane.b32.xlu0 %v38, 15
  %v129 = vpop.permute.xlu0 %128
  %vm130 = vcmp.lt.s32.totalorder %v50, 15
  %v131 = vsel %vm130, %v127, %v129
  %v132 = vsel %vm130, %v125, %v127
  %v133 = vsel %vm130, %v123, %v125
  %v134 = vsel %vm130, %v129, %v123
  %s135 = scalar_lea.vmem %s4, 8
  %v136 = vld [vmem:[%s135] sm:$0xf]
  %v138 = vlaneseq
  %v139 = vshrl.u32 %v138, 7
  %v140 = vsub.s32 0, %v139
  %v141 = vrot.slane %v136, %v140
  %v142 = vlaneseq
  %v143 = vshrl.u32 %v142, 7
  %v144 = vsub.s32 1, %v143
  %v145 = vrot.slane %v136, %v144
  %v146 = vlaneseq
  %v147 = vshrl.u32 %v146, 7
  %v148 = vsub.s32 2, %v147
  %v149 = vrot.slane %v136, %v148
  %v150 = vlaneseq
  %v151 = vshrl.u32 %v150, 7
  %v152 = vsub.s32 3, %v151
  %v153 = vrot.slane %v136, %v152
  %v158 = vmul.f32 %v134, %v141
  %v159 = vmul.f32 %v133, %v145
  %v160 = vmul.f32 %v132, %v149
  %v161 = vmul.f32 %v131, %v153
  %162 = vrot.lane.b32.xlu0 %v35, 1
  %v163 = vpop.permute.xlu0 %162
  %164 = vrot.lane.b32.xlu0 %v36, 1
  %v165 = vpop.permute.xlu0 %164
  %166 = vrot.lane.b32.xlu0 %v37, 1
  %v167 = vpop.permute.xlu0 %166
  %168 = vrot.lane.b32.xlu0 %v38, 1
  %v169 = vpop.permute.xlu0 %168
  %vm170 = vcmp.lt.s32.totalorder %v50, 1
  %v171 = vsel %vm170, %v167, %v169
  %v172 = vsel %vm170, %v165, %v167
  %v173 = vsel %vm170, %v163, %v165
  %v174 = vsel %vm170, %v169, %v163
  %s175 = scalar_lea.vmem %s4, 12
  %v176 = vld [vmem:[%s175] sm:$0xf]
  %v178 = vlaneseq
  %v179 = vshrl.u32 %v178, 7
  %v180 = vsub.s32 0, %v179
  %v181 = vrot.slane %v176, %v180
  %v182 = vlaneseq
  %v183 = vshrl.u32 %v182, 7
  %v184 = vsub.s32 1, %v183
  %v185 = vrot.slane %v176, %v184
  %v186 = vlaneseq
  %v187 = vshrl.u32 %v186, 7
  %v188 = vsub.s32 2, %v187
  %v189 = vrot.slane %v176, %v188
  %v190 = vlaneseq
  %v191 = vshrl.u32 %v190, 7
  %v192 = vsub.s32 3, %v191
  %v193 = vrot.slane %v176, %v192
  %v198 = vmul.f32 %v174, %v181
  %v199 = vmul.f32 %v173, %v185
  %v200 = vmul.f32 %v172, %v189
  %v201 = vmul.f32 %v171, %v193
  %202 = vrot.lane.b32.xlu0 %v35, 127
  %v203 = vpop.permute.xlu0 %202
  %204 = vrot.lane.b32.xlu0 %v36, 127
  %v205 = vpop.permute.xlu0 %204
  %206 = vrot.lane.b32.xlu0 %v37, 127
  %v207 = vpop.permute.xlu0 %206
  %208 = vrot.lane.b32.xlu0 %v38, 127
  %v209 = vpop.permute.xlu0 %208
  %vm210 = vcmp.lt.s32.totalorder %v50, 127
  %v211 = vsel %vm210, %v207, %v209
  %v212 = vsel %vm210, %v205, %v207
  %v213 = vsel %vm210, %v203, %v205
  %v214 = vsel %vm210, %v209, %v203
  %s215 = scalar_lea.vmem %s4, 20
  %v216 = vld [vmem:[%s215] sm:$0xf]
  %v218 = vlaneseq
  %v219 = vshrl.u32 %v218, 7
  %v220 = vsub.s32 0, %v219
  %v221 = vrot.slane %v216, %v220
  %v222 = vlaneseq
  %v223 = vshrl.u32 %v222, 7
  %v224 = vsub.s32 1, %v223
  %v225 = vrot.slane %v216, %v224
  %v226 = vlaneseq
  %v227 = vshrl.u32 %v226, 7
  %v228 = vsub.s32 2, %v227
  %v229 = vrot.slane %v216, %v228
  %v230 = vlaneseq
  %v231 = vshrl.u32 %v230, 7
  %v232 = vsub.s32 3, %v231
  %v233 = vrot.slane %v216, %v232
  %v238 = vmul.f32 %v213, %v221
  %v239 = vmul.f32 %v212, %v225
  %v240 = vmul.f32 %v211, %v229
  %v241 = vmul.f32 %v214, %v233
  %242 = vrot.lane.b32.xlu0 %v35, 113
  %v243 = vpop.permute.xlu0 %242
  %244 = vrot.lane.b32.xlu0 %v36, 113
  %v245 = vpop.permute.xlu0 %244
  %246 = vrot.lane.b32.xlu0 %v37, 113
  %v247 = vpop.permute.xlu0 %246
  %248 = vrot.lane.b32.xlu0 %v38, 113
  %v249 = vpop.permute.xlu0 %248
  %vm250 = vcmp.lt.s32.totalorder %v50, 113
  %v251 = vsel %vm250, %v247, %v249
  %v252 = vsel %vm250, %v245, %v247
  %v253 = vsel %vm250, %v243, %v245
  %v254 = vsel %vm250, %v249, %v243
  %s255 = scalar_lea.vmem %s4, 24
  %v256 = vld [vmem:[%s255] sm:$0xf]
  %v258 = vlaneseq
  %v259 = vshrl.u32 %v258, 7
  %v260 = vsub.s32 0, %v259
  %v261 = vrot.slane %v256, %v260
  %v262 = vlaneseq
  %v263 = vshrl.u32 %v262, 7
  %v264 = vsub.s32 1, %v263
  %v265 = vrot.slane %v256, %v264
  %v266 = vlaneseq
  %v267 = vshrl.u32 %v266, 7
  %v268 = vsub.s32 2, %v267
  %v269 = vrot.slane %v256, %v268
  %v270 = vlaneseq
  %v271 = vshrl.u32 %v270, 7
  %v272 = vsub.s32 3, %v271
  %v273 = vrot.slane %v256, %v272
  %v278 = vmul.f32 %v253, %v261
  %v279 = vmul.f32 %v252, %v265
  %v280 = vmul.f32 %v251, %v269
  %v281 = vmul.f32 %v254, %v273
  %282 = vrot.lane.b32.xlu0 %v35, 112
  %v283 = vpop.permute.xlu0 %282
  %284 = vrot.lane.b32.xlu0 %v36, 112
  %v285 = vpop.permute.xlu0 %284
  %286 = vrot.lane.b32.xlu0 %v37, 112
  %v287 = vpop.permute.xlu0 %286
  %288 = vrot.lane.b32.xlu0 %v38, 112
  %v289 = vpop.permute.xlu0 %288
  %vm290 = vcmp.lt.s32.totalorder %v50, 112
  %v291 = vsel %vm290, %v287, %v289
  %v292 = vsel %vm290, %v285, %v287
  %v293 = vsel %vm290, %v283, %v285
  %v294 = vsel %vm290, %v289, %v283
  %s295 = scalar_lea.vmem %s4, 28
  %v296 = vld [vmem:[%s295] sm:$0xf]
  %v298 = vlaneseq
  %v299 = vshrl.u32 %v298, 7
  %v300 = vsub.s32 0, %v299
  %v301 = vrot.slane %v296, %v300
  %v302 = vlaneseq
  %v303 = vshrl.u32 %v302, 7
  %v304 = vsub.s32 1, %v303
  %v305 = vrot.slane %v296, %v304
  %v306 = vlaneseq
  %v307 = vshrl.u32 %v306, 7
  %v308 = vsub.s32 2, %v307
  %v309 = vrot.slane %v296, %v308
  %v310 = vlaneseq
  %v311 = vshrl.u32 %v310, 7
  %v312 = vsub.s32 3, %v311
  %v313 = vrot.slane %v296, %v312
  %v318 = vmul.f32 %v293, %v301
  %v319 = vmul.f32 %v292, %v305
  %v320 = vmul.f32 %v291, %v309
  %v321 = vmul.f32 %v294, %v313
  %322 = vrot.lane.b32.xlu0 %v35, 111
  %v323 = vpop.permute.xlu0 %322
  %324 = vrot.lane.b32.xlu0 %v36, 111
  %v325 = vpop.permute.xlu0 %324
  %326 = vrot.lane.b32.xlu0 %v37, 111
  %v327 = vpop.permute.xlu0 %326
  %328 = vrot.lane.b32.xlu0 %v38, 111
  %v329 = vpop.permute.xlu0 %328
  %vm330 = vcmp.lt.s32.totalorder %v50, 111
  %v331 = vsel %vm330, %v327, %v329
  %v332 = vsel %vm330, %v325, %v327
  %v333 = vsel %vm330, %v323, %v325
  %v334 = vsel %vm330, %v329, %v323
  %s335 = scalar_lea.vmem %s4, 32
  %v336 = vld [vmem:[%s335] sm:$0xf]
  %v338 = vlaneseq
  %v339 = vshrl.u32 %v338, 7
  %v340 = vsub.s32 0, %v339
  %v341 = vrot.slane %v336, %v340
  %v342 = vlaneseq
  %v343 = vshrl.u32 %v342, 7
  %v344 = vsub.s32 1, %v343
  %v345 = vrot.slane %v336, %v344
  %v346 = vlaneseq
  %v347 = vshrl.u32 %v346, 7
  %v348 = vsub.s32 2, %v347
  %v349 = vrot.slane %v336, %v348
  %v350 = vlaneseq
  %v351 = vshrl.u32 %v350, 7
  %v352 = vsub.s32 3, %v351
  %v353 = vrot.slane %v336, %v352
  %v358 = vmul.f32 %v333, %v341
  %v359 = vmul.f32 %v332, %v345
  %v360 = vmul.f32 %v331, %v349
  %v361 = vmul.f32 %v334, %v353
  %vm362 = vcmask 588800
  %v364 = vsel %vm362, %v39, 0
  %v367 = vsel %vm362, %v40, 0
  %369 = vmatprep.subr.mxu0 0.0
  %370 = vmatpush1.msra.mxu0 0.0
  %371 = vmatprep.subr.mxu0 0.0
  %372 = vmatpush1.msra.mxu0 0.0
  %373 = vmatprep.subr.mxu0 0.0
  %374 = vmatpush1.msra.mxu0 0.0
  %375 = vmatprep.subr.mxu0 0.0
  %376 = vmatpush1.msra.mxu0 0.0
  %377 = vmatprep.subr.mxu0 0.0
  %378 = vmatpush1.msra.mxu0 0.0
  %379 = vmatprep.subr.mxu0 0.0
  %380 = vmatpush1.msra.mxu0 0.0
  %381 = vmatprep.subr.mxu0 0.0
  %382 = vmatpush1.msra.mxu0 0.0
  %383 = vmatprep.subr.mxu0 %v359
  %384 = vmatpush1.msra.mxu0 %v358
  %385 = vmatprep.subr.mxu0 %v319
  %386 = vmatpush1.msra.mxu0 %v318
  %387 = vmatprep.subr.mxu0 %v279
  %388 = vmatpush1.msra.mxu0 %v278
  %389 = vmatprep.subr.mxu0 %v239
  %390 = vmatpush1.msra.mxu0 %v238
  %391 = vmatprep.subr.mxu0 %v36
  %392 = vmatpush1.msra.mxu0 %v35
  %393 = vmatprep.subr.mxu0 %v199
  %394 = vmatpush1.msra.mxu0 %v198
  %395 = vmatprep.subr.mxu0 %v159
  %396 = vmatpush1.msra.mxu0 %v158
  %397 = vmatprep.subr.mxu0 %v119
  %398 = vmatpush1.msra.mxu0 %v118
  %399 = vmatprep.subr.mxu0 %v79
  %400 = vmatpush1.msra.mxu0 %v78
  %401 = vmatprep.subr.mxu0 0.0
  %402 = vmatpush2.msra.mxu0 0.0
  %403 = vmatprep.subr.mxu0 0.0
  %404 = vmatpush2.msra.mxu0 0.0
  %405 = vmatprep.subr.mxu0 0.0
  %406 = vmatpush2.msra.mxu0 0.0
  %407 = vmatprep.subr.mxu0 0.0
  %408 = vmatpush2.msra.mxu0 0.0
  %409 = vmatprep.subr.mxu0 0.0
  %410 = vmatpush2.msra.mxu0 0.0
  %411 = vmatprep.subr.mxu0 0.0
  %412 = vmatpush2.msra.mxu0 0.0
  %413 = vmatprep.subr.mxu0 0.0
  %414 = vmatpush2.msra.mxu0 0.0
  %415 = vmatprep.subr.mxu0 0.0
  %416 = vmatpush2.msra.mxu0 0.0
  %417 = vmatprep.subr.mxu0 0.0
  %418 = vmatpush2.msra.mxu0 0.0
  %419 = vmatprep.subr.mxu0 0.0
  %420 = vmatpush2.msra.mxu0 0.0
  %421 = vmatprep.subr.mxu0 0.0
  %422 = vmatpush2.msra.mxu0 0.0
  %423 = vmatprep.subr.mxu0 0.0
  %424 = vmatpush2.msra.mxu0 0.0
  %425 = vmatprep.subr.mxu0 0.0
  %426 = vmatpush2.msra.mxu0 0.0
  %427 = vmatprep.subr.mxu0 0.0
  %428 = vmatpush2.msra.mxu0 0.0
  %429 = vmatprep.subr.mxu0 0.0
  %430 = vmatpush2.msra.mxu0 0.0
  %431 = vmatprep.subr.mxu0 0.0
  %432 = vmatpush2.msra.mxu0 0.0
  %433 = vmatprep.mubr.f32.mxu0 0.0
  %434 = vmatmul.mubr.f32.gmra.mxu0 %v364
  %v435 = vpop.f32.mrf.mxu0
  %v436 = vadd.f32 0.0, %v435
  %v437 = vpop.f32.mrf.mxu0
  %v438 = vadd.f32 0.0, %v437
  %439 = vmatprep.mubr.f32.mxu0 0.0
  %440 = vmatmul.mubr.f32.gmra.mxu0 %v367
  %v441 = vpop.f32.mrf.mxu0
  %v442 = vadd.f32 0.0, %v441
  %v443 = vpop.f32.mrf.mxu0
  %v444 = vadd.f32 0.0, %v443
  %445 = vdwg.mxu0
  %446 = vmatprep.subr.mxu0 0.0
  %447 = vmatpush1.msra.mxu0 0.0
  %448 = vmatprep.subr.mxu0 0.0
  %449 = vmatpush1.msra.mxu0 0.0
  %450 = vmatprep.subr.mxu0 0.0
  %451 = vmatpush1.msra.mxu0 0.0
  %452 = vmatprep.subr.mxu0 0.0
  %453 = vmatpush1.msra.mxu0 0.0
  %454 = vmatprep.subr.mxu0 0.0
  %455 = vmatpush1.msra.mxu0 0.0
  %456 = vmatprep.subr.mxu0 0.0
  %457 = vmatpush1.msra.mxu0 0.0
  %458 = vmatprep.subr.mxu0 0.0
  %459 = vmatpush1.msra.mxu0 0.0
  %460 = vmatprep.subr.mxu0 %v361
  %461 = vmatpush1.msra.mxu0 %v360
  %462 = vmatprep.subr.mxu0 %v321
  %463 = vmatpush1.msra.mxu0 %v320
  %464 = vmatprep.subr.mxu0 %v281
  %465 = vmatpush1.msra.mxu0 %v280
  %466 = vmatprep.subr.mxu0 %v241
  %467 = vmatpush1.msra.mxu0 %v240
  %468 = vmatprep.subr.mxu0 %v38
  %469 = vmatpush1.msra.mxu0 %v37
  %470 = vmatprep.subr.mxu0 %v201
  %471 = vmatpush1.msra.mxu0 %v200
  %472 = vmatprep.subr.mxu0 %v161
  %473 = vmatpush1.msra.mxu0 %v160
  %474 = vmatprep.subr.mxu0 %v121
  %475 = vmatpush1.msra.mxu0 %v120
  %476 = vmatprep.subr.mxu0 %v81
  %477 = vmatpush1.msra.mxu0 %v80
  %478 = vmatprep.subr.mxu0 0.0
  %479 = vmatpush2.msra.mxu0 0.0
  %480 = vmatprep.subr.mxu0 0.0
  %481 = vmatpush2.msra.mxu0 0.0
  %482 = vmatprep.subr.mxu0 0.0
  %483 = vmatpush2.msra.mxu0 0.0
  %484 = vmatprep.subr.mxu0 0.0
  %485 = vmatpush2.msra.mxu0 0.0
  %486 = vmatprep.subr.mxu0 0.0
  %487 = vmatpush2.msra.mxu0 0.0
  %488 = vmatprep.subr.mxu0 0.0
  %489 = vmatpush2.msra.mxu0 0.0
  %490 = vmatprep.subr.mxu0 0.0
  %491 = vmatpush2.msra.mxu0 0.0
  %492 = vmatprep.subr.mxu0 0.0
  %493 = vmatpush2.msra.mxu0 0.0
  %494 = vmatprep.subr.mxu0 0.0
  %495 = vmatpush2.msra.mxu0 0.0
  %496 = vmatprep.subr.mxu0 0.0
  %497 = vmatpush2.msra.mxu0 0.0
  %498 = vmatprep.subr.mxu0 0.0
  %499 = vmatpush2.msra.mxu0 0.0
  %500 = vmatprep.subr.mxu0 0.0
  %501 = vmatpush2.msra.mxu0 0.0
  %502 = vmatprep.subr.mxu0 0.0
  %503 = vmatpush2.msra.mxu0 0.0
  %504 = vmatprep.subr.mxu0 0.0
  %505 = vmatpush2.msra.mxu0 0.0
  %506 = vmatprep.subr.mxu0 0.0
  %507 = vmatpush2.msra.mxu0 0.0
  %508 = vmatprep.subr.mxu0 0.0
  %509 = vmatpush2.msra.mxu0 0.0
  %510 = vmatprep.mubr.f32.mxu0 0.0
  %511 = vmatmul.mubr.f32.gmra.mxu0 %v364
  %v512 = vpop.f32.mrf.mxu0
  %v513 = vadd.f32 0.0, %v512
  %v514 = vpop.f32.mrf.mxu0
  %v515 = vadd.f32 0.0, %v514
  %516 = vmatprep.mubr.f32.mxu0 0.0
  %517 = vmatmul.mubr.f32.gmra.mxu0 %v367
  %v518 = vpop.f32.mrf.mxu0
  %v519 = vadd.f32 0.0, %v518
  %v520 = vpop.f32.mrf.mxu0
  %v521 = vadd.f32 0.0, %v520
  %522 = vdwg.mxu0
  %s523 = smul.u32 512, 1
  %s524 = sshll.u32 %s523, 4
  %525 = dma.done [#allocation3], %s524
  %v526 = vld [vmem:[#allocation2] sm:$0xff]
  %v527 = vld [vmem:[#allocation2 + $0x8] sm:$0xff]
  %v528 = vld [vmem:[#allocation2 + $0x10] sm:$0xff]
  %v529 = vld [vmem:[#allocation2 + $0x18] sm:$0xff]
  %v530 = vld [vmem:[#allocation2 + $0x20] sm:$0xff]
  %v531 = vld [vmem:[#allocation2 + $0x28] sm:$0xff]
  %v532 = vld [vmem:[#allocation2 + $0x30] sm:$0xff]
  %v533 = vld [vmem:[#allocation2 + $0x38] sm:$0xff]
  %v534 = vld [vmem:[#allocation2 + $0x40] sm:$0xff]
  %v535 = vld [vmem:[#allocation2 + $0x48] sm:$0xff]
  %v536 = vld [vmem:[#allocation2 + $0x50] sm:$0xff]
  %v537 = vld [vmem:[#allocation2 + $0x58] sm:$0xff]
  %v538 = vld [vmem:[#allocation2 + $0x60] sm:$0xff]
  %v539 = vld [vmem:[#allocation2 + $0x68] sm:$0xff]
  %v540 = vld [vmem:[#allocation2 + $0x70] sm:$0xff]
  %v541 = vld [vmem:[#allocation2 + $0x78] sm:$0xff]
  %v542 = vld [vmem:[#allocation2 + $0x80] sm:$0xff]
  %v543 = vld [vmem:[#allocation2 + $0x88] sm:$0xff]
  %v544 = vld [vmem:[#allocation2 + $0x90] sm:$0xff]
  %v545 = vld [vmem:[#allocation2 + $0x98] sm:$0xff]
  %v546 = vld [vmem:[#allocation2 + $0xa0] sm:$0xff]
  %v547 = vld [vmem:[#allocation2 + $0xa8] sm:$0xff]
  %v548 = vld [vmem:[#allocation2 + $0xb0] sm:$0xff]
  %v549 = vld [vmem:[#allocation2 + $0xb8] sm:$0xff]
  %v550 = vld [vmem:[#allocation2 + $0xc0] sm:$0xff]
  %v551 = vld [vmem:[#allocation2 + $0xc8] sm:$0xff]
  %v552 = vld [vmem:[#allocation2 + $0xd0] sm:$0xff]
  %v553 = vld [vmem:[#allocation2 + $0xd8] sm:$0xff]
  %v554 = vld [vmem:[#allocation2 + $0xe0] sm:$0xff]
  %v555 = vld [vmem:[#allocation2 + $0xe8] sm:$0xff]
  %v556 = vld [vmem:[#allocation2 + $0xf0] sm:$0xff]
  %v557 = vld [vmem:[#allocation2 + $0xf8] sm:$0xff]
  %v558 = vld [vmem:[#allocation2 + $0x100] sm:$0xff]
  %v559 = vld [vmem:[#allocation2 + $0x108] sm:$0xff]
  %v560 = vld [vmem:[#allocation2 + $0x110] sm:$0xff]
  %v561 = vld [vmem:[#allocation2 + $0x118] sm:$0xff]
  %v562 = vld [vmem:[#allocation2 + $0x120] sm:$0xff]
  %v563 = vld [vmem:[#allocation2 + $0x128] sm:$0xff]
  %v564 = vld [vmem:[#allocation2 + $0x130] sm:$0xff]
  %v565 = vld [vmem:[#allocation2 + $0x138] sm:$0xff]
  %v566 = vld [vmem:[#allocation2 + $0x140] sm:$0xff]
  %v567 = vld [vmem:[#allocation2 + $0x148] sm:$0xff]
  %v568 = vld [vmem:[#allocation2 + $0x150] sm:$0xff]
  %v569 = vld [vmem:[#allocation2 + $0x158] sm:$0xff]
  %v570 = vld [vmem:[#allocation2 + $0x160] sm:$0xff]
  %v571 = vld [vmem:[#allocation2 + $0x168] sm:$0xff]
  %v572 = vld [vmem:[#allocation2 + $0x170] sm:$0xff]
  %v573 = vld [vmem:[#allocation2 + $0x178] sm:$0xff]
  %v574 = vld [vmem:[#allocation2 + $0x180] sm:$0xff]
  %v575 = vld [vmem:[#allocation2 + $0x188] sm:$0xff]
  %v576 = vld [vmem:[#allocation2 + $0x190] sm:$0xff]
  %v577 = vld [vmem:[#allocation2 + $0x198] sm:$0xff]
  %v578 = vld [vmem:[#allocation2 + $0x1a0] sm:$0xff]
  %v579 = vld [vmem:[#allocation2 + $0x1a8] sm:$0xff]
  %v580 = vld [vmem:[#allocation2 + $0x1b0] sm:$0xff]
  %v581 = vld [vmem:[#allocation2 + $0x1b8] sm:$0xff]
  %v582 = vld [vmem:[#allocation2 + $0x1c0] sm:$0xff]
  %v583 = vld [vmem:[#allocation2 + $0x1c8] sm:$0xff]
  %v584 = vld [vmem:[#allocation2 + $0x1d0] sm:$0xff]
  %v585 = vld [vmem:[#allocation2 + $0x1d8] sm:$0xff]
  %v586 = vld [vmem:[#allocation2 + $0x1e0] sm:$0xff]
  %v587 = vld [vmem:[#allocation2 + $0x1e8] sm:$0xff]
  %v588 = vld [vmem:[#allocation2 + $0x1f0] sm:$0xff]
  %v589 = vld [vmem:[#allocation2 + $0x1f8] sm:$0xff]
  %590 = vmatprep.subr.mxu0 0.0
  %591 = vmatpush1.msra.mxu0 %v541
  %592 = vmatprep.subr.mxu0 0.0
  %593 = vmatpush1.msra.mxu0 %v540
  %594 = vmatprep.subr.mxu0 0.0
  %595 = vmatpush1.msra.mxu0 %v539
  %596 = vmatprep.subr.mxu0 0.0
  %597 = vmatpush1.msra.mxu0 %v538
  %598 = vmatprep.subr.mxu0 0.0
  %599 = vmatpush1.msra.mxu0 %v537
  %600 = vmatprep.subr.mxu0 0.0
  %601 = vmatpush1.msra.mxu0 %v536
  %602 = vmatprep.subr.mxu0 0.0
  %603 = vmatpush1.msra.mxu0 %v535
  %604 = vmatprep.subr.mxu0 0.0
  %605 = vmatpush1.msra.mxu0 %v534
  %606 = vmatprep.subr.mxu0 0.0
  %607 = vmatpush1.msra.mxu0 %v533
  %608 = vmatprep.subr.mxu0 0.0
  %609 = vmatpush1.msra.mxu0 %v532
  %610 = vmatprep.subr.mxu0 0.0
  %611 = vmatpush1.msra.mxu0 %v531
  %612 = vmatprep.subr.mxu0 0.0
  %613 = vmatpush1.msra.mxu0 %v530
  %614 = vmatprep.subr.mxu0 0.0
  %615 = vmatpush1.msra.mxu0 %v529
  %616 = vmatprep.subr.mxu0 0.0
  %617 = vmatpush1.msra.mxu0 %v528
  %618 = vmatprep.subr.mxu0 0.0
  %619 = vmatpush1.msra.mxu0 %v527
  %620 = vmatprep.subr.mxu0 0.0
  %621 = vmatpush1.msra.mxu0 %v526
  %622 = vmatprep.subr.mxu0 0.0
  %623 = vmatpush2.msra.mxu0 %v557
  %624 = vmatprep.subr.mxu0 0.0
  %625 = vmatpush2.msra.mxu0 %v556
  %626 = vmatprep.subr.mxu0 0.0
  %627 = vmatpush2.msra.mxu0 %v555
  %628 = vmatprep.subr.mxu0 0.0
  %629 = vmatpush2.msra.mxu0 %v554
  %630 = vmatprep.subr.mxu0 0.0
  %631 = vmatpush2.msra.mxu0 %v553
  %632 = vmatprep.subr.mxu0 0.0
  %633 = vmatpush2.msra.mxu0 %v552
  %634 = vmatprep.subr.mxu0 0.0
  %635 = vmatpush2.msra.mxu0 %v551
  %636 = vmatprep.subr.mxu0 0.0
  %637 = vmatpush2.msra.mxu0 %v550
  %638 = vmatprep.subr.mxu0 0.0
  %639 = vmatpush2.msra.mxu0 %v549
  %640 = vmatprep.subr.mxu0 0.0
  %641 = vmatpush2.msra.mxu0 %v548
  %642 = vmatprep.subr.mxu0 0.0
  %643 = vmatpush2.msra.mxu0 %v547
  %644 = vmatprep.subr.mxu0 0.0
  %645 = vmatpush2.msra.mxu0 %v546
  %646 = vmatprep.subr.mxu0 0.0
  %647 = vmatpush2.msra.mxu0 %v545
  %648 = vmatprep.subr.mxu0 0.0
  %649 = vmatpush2.msra.mxu0 %v544
  %650 = vmatprep.subr.mxu0 0.0
  %651 = vmatpush2.msra.mxu0 %v543
  %652 = vmatprep.subr.mxu0 0.0
  %653 = vmatpush2.msra.mxu0 %v542
  %654 = vmatprep.mubr.f32.mxu0 %v438
  %655 = vmatmul.mubr.f32.gmra.mxu0 %v436
  %v656 = vpop.f32.mrf.mxu0
  %v657 = vadd.f32 0.0, %v656
  %v658 = vpop.f32.mrf.mxu0
  %659 = vmatprep.mubr.f32.mxu0 %v444
  %660 = vmatmul.mubr.f32.gmra.mxu0 %v442
  %v661 = vpop.f32.mrf.mxu0
  %v662 = vadd.f32 0.0, %v661
  %v663 = vpop.f32.mrf.mxu0
  %664 = vdwg.mxu0
  %665 = vmatprep.subr.mxu0 0.0
  %666 = vmatpush1.msra.mxu0 %v573
  %667 = vmatprep.subr.mxu0 0.0
  %668 = vmatpush1.msra.mxu0 %v572
  %669 = vmatprep.subr.mxu0 0.0
  %670 = vmatpush1.msra.mxu0 %v571
  %671 = vmatprep.subr.mxu0 0.0
  %672 = vmatpush1.msra.mxu0 %v570
  %673 = vmatprep.subr.mxu0 0.0
  %674 = vmatpush1.msra.mxu0 %v569
  %675 = vmatprep.subr.mxu0 0.0
  %676 = vmatpush1.msra.mxu0 %v568
  %677 = vmatprep.subr.mxu0 0.0
  %678 = vmatpush1.msra.mxu0 %v567
  %679 = vmatprep.subr.mxu0 0.0
  %680 = vmatpush1.msra.mxu0 %v566
  %681 = vmatprep.subr.mxu0 0.0
  %682 = vmatpush1.msra.mxu0 %v565
  %683 = vmatprep.subr.mxu0 0.0
  %684 = vmatpush1.msra.mxu0 %v564
  %685 = vmatprep.subr.mxu0 0.0
  %686 = vmatpush1.msra.mxu0 %v563
  %687 = vmatprep.subr.mxu0 0.0
  %688 = vmatpush1.msra.mxu0 %v562
  %689 = vmatprep.subr.mxu0 0.0
  %690 = vmatpush1.msra.mxu0 %v561
  %691 = vmatprep.subr.mxu0 0.0
  %692 = vmatpush1.msra.mxu0 %v560
  %693 = vmatprep.subr.mxu0 0.0
  %694 = vmatpush1.msra.mxu0 %v559
  %695 = vmatprep.subr.mxu0 0.0
  %696 = vmatpush1.msra.mxu0 %v558
  %697 = vmatprep.subr.mxu0 0.0
  %698 = vmatpush2.msra.mxu0 %v589
  %699 = vmatprep.subr.mxu0 0.0
  %700 = vmatpush2.msra.mxu0 %v588
  %701 = vmatprep.subr.mxu0 0.0
  %702 = vmatpush2.msra.mxu0 %v587
  %703 = vmatprep.subr.mxu0 0.0
  %704 = vmatpush2.msra.mxu0 %v586
  %705 = vmatprep.subr.mxu0 0.0
  %706 = vmatpush2.msra.mxu0 %v585
  %707 = vmatprep.subr.mxu0 0.0
  %708 = vmatpush2.msra.mxu0 %v584
  %709 = vmatprep.subr.mxu0 0.0
  %710 = vmatpush2.msra.mxu0 %v583
  %711 = vmatprep.subr.mxu0 0.0
  %712 = vmatpush2.msra.mxu0 %v582
  %713 = vmatprep.subr.mxu0 0.0
  %714 = vmatpush2.msra.mxu0 %v581
  %715 = vmatprep.subr.mxu0 0.0
  %716 = vmatpush2.msra.mxu0 %v580
  %717 = vmatprep.subr.mxu0 0.0
  %718 = vmatpush2.msra.mxu0 %v579
  %719 = vmatprep.subr.mxu0 0.0
  %720 = vmatpush2.msra.mxu0 %v578
  %721 = vmatprep.subr.mxu0 0.0
  %722 = vmatpush2.msra.mxu0 %v577
  %723 = vmatprep.subr.mxu0 0.0
  %724 = vmatpush2.msra.mxu0 %v576
  %725 = vmatprep.subr.mxu0 0.0
  %726 = vmatpush2.msra.mxu0 %v575
  %727 = vmatprep.subr.mxu0 0.0
  %728 = vmatpush2.msra.mxu0 %v574
  %729 = vmatprep.mubr.f32.mxu0 %v515
  %730 = vmatmul.mubr.f32.gmra.mxu0 %v513
  %v731 = vpop.f32.mrf.mxu0
  %v732 = vadd.f32 %v657, %v731
  %v733 = vpop.f32.mrf.mxu0
  %734 = vmatprep.mubr.f32.mxu0 %v521
  %735 = vmatmul.mubr.f32.gmra.mxu0 %v519
  %v736 = vpop.f32.mrf.mxu0
  %v737 = vadd.f32 %v662, %v736
  %v738 = vpop.f32.mrf.mxu0
  %739 = vdwg.mxu0
  %v740 = vld [vmem:[%s3] sm:$0xff]
  %742 = vset.pattern.permute.xlu0 0
  %743 = vperm.xlu0 %742, %v740
  %v744 = vpop.permute.xlu0 %743
  %v746 = vadd.f32 %v732, %v744
  %747 = vset.pattern.permute.xlu0 1
  %748 = vperm.xlu0 %747, %v740
  %v749 = vpop.permute.xlu0 %748
  %v751 = vadd.f32 %v737, %v749
  %752 = vadd.xlane.f32.xlu0 %v746
  %v753 = vpop.xlane.xlu0 %752
  %v754 = vrcp.pop 128.0
  %v755 = vmul.f32 %v753, %v754
  %v756 = vsub.f32 %v746, %v755
  %v757 = vmul.f32 %v756, %v756
  %758 = vadd.xlane.f32.xlu0 %v757
  %v759 = vpop.xlane.xlu0 %758
  %v760 = vmul.f32 %v759, %v754
  %v761 = vadd.f32 %v760, 1e-05
  %v762 = vrsqrt.pop %v761
  %v763 = vmul.f32 %v756, %v762
  %764 = vset.pattern.permute.xlu0 4
  %765 = vperm.xlu0 %764, %v740
  %v766 = vpop.permute.xlu0 %765
  %v768 = vmul.f32 %v763, %v766
  %769 = vset.pattern.permute.xlu0 5
  %770 = vperm.xlu0 %769, %v740
  %v771 = vpop.permute.xlu0 %770
  %v773 = vadd.f32 %v768, %v771
  %vm774 = vcmp.gt.f32.partialorder %v773, 0.0
  %v775 = vmul.f32 %v773, 0.01
  %v776 = vsel %vm774, %v773, %v775
  %v777 = vld [vmem:[%s2] sm:$0xff]
  %778 = vrot.lane.b32.xlu0 %v776, 9
  %v779 = vpop.permute.xlu0 %778
  %v780 = vld [vmem:[%s5] sm:$0x1]
  %v782 = vlaneseq
  %v783 = vshrl.u32 %v782, 7
  %v784 = vsub.s32 0, %v783
  %v785 = vrot.slane %v780, %v784
  %v787 = vmul.f32 %v779, %v785
  %788 = vrot.lane.b32.xlu0 %v776, 8
  %v789 = vpop.permute.xlu0 %788
  %s790 = scalar_lea.vmem %s5, 1
  %v791 = vld [vmem:[%s790] sm:$0x1]
  %v793 = vlaneseq
  %v794 = vshrl.u32 %v793, 7
  %v795 = vsub.s32 0, %v794
  %v796 = vrot.slane %v791, %v795
  %v798 = vmul.f32 %v789, %v796
  %799 = vrot.lane.b32.xlu0 %v776, 7
  %v800 = vpop.permute.xlu0 %799
  %s801 = scalar_lea.vmem %s5, 2
  %v802 = vld [vmem:[%s801] sm:$0x1]
  %v804 = vlaneseq
  %v805 = vshrl.u32 %v804, 7
  %v806 = vsub.s32 0, %v805
  %v807 = vrot.slane %v802, %v806
  %v809 = vmul.f32 %v800, %v807
  %810 = vrot.lane.b32.xlu0 %v776, 1
  %v811 = vpop.permute.xlu0 %810
  %s812 = scalar_lea.vmem %s5, 3
  %v813 = vld [vmem:[%s812] sm:$0x1]
  %v815 = vlaneseq
  %v816 = vshrl.u32 %v815, 7
  %v817 = vsub.s32 0, %v816
  %v818 = vrot.slane %v813, %v817
  %v820 = vmul.f32 %v811, %v818
  %821 = vrot.lane.b32.xlu0 %v776, 127
  %v822 = vpop.permute.xlu0 %821
  %s823 = scalar_lea.vmem %s5, 5
  %v824 = vld [vmem:[%s823] sm:$0x1]
  %v826 = vlaneseq
  %v827 = vshrl.u32 %v826, 7
  %v828 = vsub.s32 0, %v827
  %v829 = vrot.slane %v824, %v828
  %v831 = vmul.f32 %v822, %v829
  %832 = vrot.lane.b32.xlu0 %v776, 121
  %v833 = vpop.permute.xlu0 %832
  %s834 = scalar_lea.vmem %s5, 6
  %v835 = vld [vmem:[%s834] sm:$0x1]
  %v837 = vlaneseq
  %v838 = vshrl.u32 %v837, 7
  %v839 = vsub.s32 0, %v838
  %v840 = vrot.slane %v835, %v839
  %v842 = vmul.f32 %v833, %v840
  %843 = vrot.lane.b32.xlu0 %v776, 120
  %v844 = vpop.permute.xlu0 %843
  %s845 = scalar_lea.vmem %s5, 7
  %v846 = vld [vmem:[%s845] sm:$0x1]
  %v848 = vlaneseq
  %v849 = vshrl.u32 %v848, 7
  %v850 = vsub.s32 0, %v849
  %v851 = vrot.slane %v846, %v850
  %v853 = vmul.f32 %v844, %v851
  %854 = vrot.lane.b32.xlu0 %v776, 119
  %v855 = vpop.permute.xlu0 %854
  %s856 = scalar_lea.vmem %s5, 8
  %v857 = vld [vmem:[%s856] sm:$0x1]
  %v859 = vlaneseq
  %v860 = vshrl.u32 %v859, 7
  %v861 = vsub.s32 0, %v860
  %v862 = vrot.slane %v857, %v861
  %v864 = vmul.f32 %v855, %v862
  %865 = vset.pattern.permute.xlu0 2
  %866 = vperm.xlu0 %865, %v740
  %v867 = vpop.permute.xlu0 %866
  %v870 = vsel %vm362, %v777, 0
  %872 = vmatprep.subr.mxu0 0.0
  %873 = vmatpush1.msra.mxu0 0.0
  %874 = vmatprep.subr.mxu0 0.0
  %875 = vmatpush1.msra.mxu0 0.0
  %876 = vmatprep.subr.mxu0 0.0
  %877 = vmatpush1.msra.mxu0 0.0
  %878 = vmatprep.subr.mxu0 0.0
  %879 = vmatpush1.msra.mxu0 0.0
  %880 = vmatprep.subr.mxu0 0.0
  %881 = vmatpush1.msra.mxu0 0.0
  %882 = vmatprep.subr.mxu0 0.0
  %883 = vmatpush1.msra.mxu0 0.0
  %884 = vmatprep.subr.mxu0 0.0
  %885 = vmatpush1.msra.mxu0 0.0
  %886 = vmatprep.subr.mxu0 0.0
  %887 = vmatpush1.msra.mxu0 %v864
  %888 = vmatprep.subr.mxu0 0.0
  %889 = vmatpush1.msra.mxu0 %v853
  %890 = vmatprep.subr.mxu0 0.0
  %891 = vmatpush1.msra.mxu0 %v842
  %892 = vmatprep.subr.mxu0 0.0
  %893 = vmatpush1.msra.mxu0 %v831
  %894 = vmatprep.subr.mxu0 0.0
  %895 = vmatpush1.msra.mxu0 %v776
  %896 = vmatprep.subr.mxu0 0.0
  %897 = vmatpush1.msra.mxu0 %v820
  %898 = vmatprep.subr.mxu0 0.0
  %899 = vmatpush1.msra.mxu0 %v809
  %900 = vmatprep.subr.mxu0 0.0
  %901 = vmatpush1.msra.mxu0 %v798
  %902 = vmatprep.subr.mxu0 0.0
  %903 = vmatpush1.msra.mxu0 %v787
  %904 = vmatprep.subr.mxu0 0.0
  %905 = vmatpush2.msra.mxu0 0.0
  %906 = vmatprep.subr.mxu0 0.0
  %907 = vmatpush2.msra.mxu0 0.0
  %908 = vmatprep.subr.mxu0 0.0
  %909 = vmatpush2.msra.mxu0 0.0
  %910 = vmatprep.subr.mxu0 0.0
  %911 = vmatpush2.msra.mxu0 0.0
  %912 = vmatprep.subr.mxu0 0.0
  %913 = vmatpush2.msra.mxu0 0.0
  %914 = vmatprep.subr.mxu0 0.0
  %915 = vmatpush2.msra.mxu0 0.0
  %916 = vmatprep.subr.mxu0 0.0
  %917 = vmatpush2.msra.mxu0 0.0
  %918 = vmatprep.subr.mxu0 0.0
  %919 = vmatpush2.msra.mxu0 0.0
  %920 = vmatprep.subr.mxu0 0.0
  %921 = vmatpush2.msra.mxu0 0.0
  %922 = vmatprep.subr.mxu0 0.0
  %923 = vmatpush2.msra.mxu0 0.0
  %924 = vmatprep.subr.mxu0 0.0
  %925 = vmatpush2.msra.mxu0 0.0
  %926 = vmatprep.subr.mxu0 0.0
  %927 = vmatpush2.msra.mxu0 0.0
  %928 = vmatprep.subr.mxu0 0.0
  %929 = vmatpush2.msra.mxu0 0.0
  %930 = vmatprep.subr.mxu0 0.0
  %931 = vmatpush2.msra.mxu0 0.0
  %932 = vmatprep.subr.mxu0 0.0
  %933 = vmatpush2.msra.mxu0 0.0
  %934 = vmatprep.subr.mxu0 0.0
  %935 = vmatpush2.msra.mxu0 0.0
  %936 = vmatprep.mubr.f32.mxu0 0.0
  %937 = vmatmul.mubr.f32.gmra.mxu0 %v870
  %v938 = vpop.f32.mrf.mxu0
  %v939 = vadd.f32 %v867, %v938
  %v940 = vpop.f32.mrf.mxu0
  %941 = vdwg.mxu0
  %vm942 = vcmp.gt.f32.partialorder %v939, 0.0
  %v943 = vmul.f32 %v939, 0.01
  %v944 = vsel %vm942, %v939, %v943
  %s945 = scalar_lea.vmem %s2, 8
  %v946 = vld [vmem:[%s945] sm:$0xff]
  %947 = vrot.lane.b32.xlu0 %v944, 9
  %v948 = vpop.permute.xlu0 %947
  %v949 = vmul.f32 %v948, %v785
  %950 = vrot.lane.b32.xlu0 %v944, 8
  %v951 = vpop.permute.xlu0 %950
  %v952 = vmul.f32 %v951, %v796
  %953 = vrot.lane.b32.xlu0 %v944, 7
  %v954 = vpop.permute.xlu0 %953
  %v955 = vmul.f32 %v954, %v807
  %956 = vrot.lane.b32.xlu0 %v944, 1
  %v957 = vpop.permute.xlu0 %956
  %v958 = vmul.f32 %v957, %v818
  %959 = vrot.lane.b32.xlu0 %v944, 127
  %v960 = vpop.permute.xlu0 %959
  %v961 = vmul.f32 %v960, %v829
  %962 = vrot.lane.b32.xlu0 %v944, 121
  %v963 = vpop.permute.xlu0 %962
  %v964 = vmul.f32 %v963, %v840
  %965 = vrot.lane.b32.xlu0 %v944, 120
  %v966 = vpop.permute.xlu0 %965
  %v967 = vmul.f32 %v966, %v851
  %968 = vrot.lane.b32.xlu0 %v944, 119
  %v969 = vpop.permute.xlu0 %968
  %v970 = vmul.f32 %v969, %v862
  %971 = vset.pattern.permute.xlu0 3
  %972 = vperm.xlu0 %971, %v740
  %v973 = vpop.permute.xlu0 %972
  %v976 = vsel %vm362, %v946, 0
  %978 = vmatprep.subr.mxu0 0.0
  %979 = vmatpush1.msra.mxu0 0.0
  %980 = vmatprep.subr.mxu0 0.0
  %981 = vmatpush1.msra.mxu0 0.0
  %982 = vmatprep.subr.mxu0 0.0
  %983 = vmatpush1.msra.mxu0 0.0
  %984 = vmatprep.subr.mxu0 0.0
  %985 = vmatpush1.msra.mxu0 0.0
  %986 = vmatprep.subr.mxu0 0.0
  %987 = vmatpush1.msra.mxu0 0.0
  %988 = vmatprep.subr.mxu0 0.0
  %989 = vmatpush1.msra.mxu0 0.0
  %990 = vmatprep.subr.mxu0 0.0
  %991 = vmatpush1.msra.mxu0 0.0
  %992 = vmatprep.subr.mxu0 0.0
  %993 = vmatpush1.msra.mxu0 %v970
  %994 = vmatprep.subr.mxu0 0.0
  %995 = vmatpush1.msra.mxu0 %v967
  %996 = vmatprep.subr.mxu0 0.0
  %997 = vmatpush1.msra.mxu0 %v964
  %998 = vmatprep.subr.mxu0 0.0
  %999 = vmatpush1.msra.mxu0 %v961
  %1000 = vmatprep.subr.mxu0 0.0
  %1001 = vmatpush1.msra.mxu0 %v944
  %1002 = vmatprep.subr.mxu0 0.0
  %1003 = vmatpush1.msra.mxu0 %v958
  %1004 = vmatprep.subr.mxu0 0.0
  %1005 = vmatpush1.msra.mxu0 %v955
  %1006 = vmatprep.subr.mxu0 0.0
  %1007 = vmatpush1.msra.mxu0 %v952
  %1008 = vmatprep.subr.mxu0 0.0
  %1009 = vmatpush1.msra.mxu0 %v949
  %1010 = vmatprep.subr.mxu0 0.0
  %1011 = vmatpush2.msra.mxu0 0.0
  %1012 = vmatprep.subr.mxu0 0.0
  %1013 = vmatpush2.msra.mxu0 0.0
  %1014 = vmatprep.subr.mxu0 0.0
  %1015 = vmatpush2.msra.mxu0 0.0
  %1016 = vmatprep.subr.mxu0 0.0
  %1017 = vmatpush2.msra.mxu0 0.0
  %1018 = vmatprep.subr.mxu0 0.0
  %1019 = vmatpush2.msra.mxu0 0.0
  %1020 = vmatprep.subr.mxu0 0.0
  %1021 = vmatpush2.msra.mxu0 0.0
  %1022 = vmatprep.subr.mxu0 0.0
  %1023 = vmatpush2.msra.mxu0 0.0
  %1024 = vmatprep.subr.mxu0 0.0
  %1025 = vmatpush2.msra.mxu0 0.0
  %1026 = vmatprep.subr.mxu0 0.0
  %1027 = vmatpush2.msra.mxu0 0.0
  %1028 = vmatprep.subr.mxu0 0.0
  %1029 = vmatpush2.msra.mxu0 0.0
  %1030 = vmatprep.subr.mxu0 0.0
  %1031 = vmatpush2.msra.mxu0 0.0
  %1032 = vmatprep.subr.mxu0 0.0
  %1033 = vmatpush2.msra.mxu0 0.0
  %1034 = vmatprep.subr.mxu0 0.0
  %1035 = vmatpush2.msra.mxu0 0.0
  %1036 = vmatprep.subr.mxu0 0.0
  %1037 = vmatpush2.msra.mxu0 0.0
  %1038 = vmatprep.subr.mxu0 0.0
  %1039 = vmatpush2.msra.mxu0 0.0
  %1040 = vmatprep.subr.mxu0 0.0
  %1041 = vmatpush2.msra.mxu0 0.0
  %1042 = vmatprep.mubr.f32.mxu0 0.0
  %1043 = vmatmul.mubr.f32.gmra.mxu0 %v976
  %v1044 = vpop.f32.mrf.mxu0
  %v1045 = vadd.f32 %v973, %v1044
  %v1046 = vpop.f32.mrf.mxu0
  %1047 = vdwg.mxu0
  %vm1048 = vcmp.gt.f32.partialorder %v1045, 0.0
  %v1049 = vmul.f32 %v1045, 0.01
  %v1050 = vsel %vm1048, %v1045, %v1049
  %v1051 = vadd.f32 %v1050, %v751
  %1052 = vst [vmem:[%s7] sm:$0xff] %v1051
  // Predicated region
  $region30: #{res_module_forward.1} parent=0 // pred_check
    _
  $region31: #{res_module_forward.1} parent=0 // pred_check_branch
    %1054 = sbr.rel (0) target = $region33
  $region32: #{res_module_forward.1} parent=0 // pred_region
    _
  $region33: #{res_module_forward.1} parent=0 // pred_fallthru
    _
  // Predicated region
  $region34: #{res_module_forward.1} parent=0 // pred_check
    _
  $region35: #{res_module_forward.1} parent=0 // pred_check_branch
    %1056 = sbr.rel (0) target = $region37
  $region36: #{res_module_forward.1} parent=0 // pred_region
    _
  $region37: #{res_module_forward.1} parent=0 // pred_fallthru
    _
  %1057 = vsyncmov [#allocation3]
  %s1058 = vpop.sfrf %1057
  %p1059 = scmp.eq.s32.totalorder %s1058, 0
  %p1060 = pneg %p1059
  %1062 = shalt.err (%p1060)

</llo_original>
